<compile_context>
chip_gen: v5e
topology: v5e:2x2
jax: 0.10.0
libtpu: 0.0.40
codegen_flags: <defaults>
</compile_context>

<pallas_src>
import functools

import jax
import jax.numpy as jnp
import numpy as np
from jax.experimental import pallas as pl
from jax.experimental.pallas import tpu as pltpu


def _attn_decoder_step_kernel(nlayers, batch, hidden,
                              tok_ref, emb_ref, h0_ref, c0_ref,
                              wcat_ref, b_ref, enc_ref,
                              wcc_ref, bcc_ref, wout_ref, bout_ref,
                              logits_ref, hout_ref, cout_ref, attnw_ref,
                              x_scr):
    """One AttnDecoderRNN step, everything resident in VMEM."""
    L, B, H = nlayers, batch, hidden

    # ---- embedding gather: token ids in SMEM, table in VMEM ----
    for b in range(B):                                             # static, small B
        x_scr[pl.ds(b, 1), :] = emb_ref[pl.ds(tok_ref[b], 1), :]
    x = x_scr[...]                                                 # (B, H) f32
    # dropout on the embedding = identity (eval mode)

    # ---- stacked LSTM, one step; fused [x, h] @ [W_ih^T ; W_hh^T] gate matmul ----
    for l in range(L):                                             # static, small L
        h = h0_ref[l]                                              # (B, H) f32
        c = c0_ref[l]                                              # (B, H) f32
        xh = jnp.concatenate([x, h], axis=-1).astype(jnp.bfloat16)   # (B, 2H)
        gates = (jnp.dot(xh, wcat_ref[l], preferred_element_type=jnp.float32)
                 + b_ref[l])                                       # (B, 4H) += (1, 4H)

        i_g = jax.nn.sigmoid(gates[:, 0 * H:1 * H])
        f_g = jax.nn.sigmoid(gates[:, 1 * H:2 * H])
        g_g = jnp.tanh(gates[:, 2 * H:3 * H])
        o_g = jax.nn.sigmoid(gates[:, 3 * H:4 * H])

        c_new = f_g * c + i_g * g_g
        h_new = o_g * jnp.tanh(c_new)

        hout_ref[l] = h_new
        cout_ref[l] = c_new
        x = h_new                                # inter-layer dropout = identity (eval)

    # ---- dot-product attention over encoder outputs (pure VPU/XLU, exact f32) ----
    enc = enc_ref[...]                                             # (B, S, H) f32
    scores = jnp.sum(x[:, None, :] * enc, axis=-1)                 # (B, S)
    m = jnp.max(scores, axis=-1, keepdims=True)
    e = jnp.exp(scores - m)
    attn_w = e / jnp.sum(e, axis=-1, keepdims=True)                # softmax over S
    attnw_ref[...] = attn_w
    context = jnp.sum(attn_w[:, :, None] * enc, axis=1)            # (B, H)

    # ---- concat -> Linear(2H, H) -> tanh -> Linear(H, O) ----
    cat = jnp.concatenate([x, context], axis=-1).astype(jnp.bfloat16)   # (B, 2H)
    concat_out = jnp.tanh(jnp.dot(cat, wcc_ref[...],
                                  preferred_element_type=jnp.float32)
                          + bcc_ref[...])                          # (B, H) f32
    logits_ref[...] = (jnp.dot(concat_out.astype(jnp.bfloat16), wout_ref[...],
                               preferred_element_type=jnp.float32)
                       + bout_ref[...])                            # (B, O)


def attn_decoder_rnn_forward(tokens, last_hidden, encoder_outputs, params):
    """Equivalent of AttnDecoderRNN.forward(input, last_hidden, encoder_outputs) (eval).

    tokens          : (B,) int32 token ids
    last_hidden     : (h, c), each (L, B, H) float32
    encoder_outputs : (S, B, H) float32 (seq-first, like PyTorch)
    returns         : (logits (B, O), (h_new, c_new), attn_weights (B, S))
    """
    h0, c0 = last_hidden
    L, B, H = h0.shape
    S = encoder_outputs.shape[0]
    O = params["w_out_t"].shape[1]

    # Layout plumbing only: present encoder outputs batch-first to the kernel.
    enc_bsh = jnp.transpose(encoder_outputs, (1, 0, 2))            # (B, S, H)

    vmem = pl.BlockSpec(memory_space=pltpu.MemorySpace.VMEM)
    smem = pl.BlockSpec(memory_space=pltpu.MemorySpace.SMEM)
    kernel = functools.partial(_attn_decoder_step_kernel, L, B, H)

    logits, h_new, c_new, attn_w = pl.pallas_call(
        kernel,
        out_shape=(
            jax.ShapeDtypeStruct((B, O), jnp.float32),
            jax.ShapeDtypeStruct((L, B, H), jnp.float32),
            jax.ShapeDtypeStruct((L, B, H), jnp.float32),
            jax.ShapeDtypeStruct((B, S), jnp.float32),
        ),
        in_specs=[smem] + [vmem] * 10,
        out_specs=(vmem, vmem, vmem, vmem),
        scratch_shapes=[pltpu.VMEM((B, H), jnp.float32)],
        compiler_params=pltpu.CompilerParams(vmem_limit_bytes=32 * 1024 * 1024),
    )(tokens, params["embedding"], h0, c0,
      params["w_cat"], params["bias"], enc_bsh,
      params["w_concat_t"], params["b_concat"],
      params["w_out_t"], params["b_out"])

    return logits, (h_new, c_new), attn_w


def init_params(key, hidden_size, output_size, nlayers):
    """Deterministic synthetic parameters matching the PyTorch module's shapes."""
    H, O, L = hidden_size, output_size, nlayers
    ks = jax.random.split(key, 9)
    scale = 1.0 / np.sqrt(H)

    embedding = jax.random.normal(ks[0], (O, H), jnp.float32)

    # PyTorch LSTM weights are (4H, H) per layer (input size == hidden size here).
    w_ih = jax.random.uniform(ks[1], (L, 4 * H, H), jnp.float32, -scale, scale)
    w_hh = jax.random.uniform(ks[2], (L, 4 * H, H), jnp.float32, -scale, scale)
    b_ih = jax.random.uniform(ks[3], (L, 4 * H), jnp.float32, -scale, scale)
    b_hh = jax.random.uniform(ks[4], (L, 4 * H), jnp.float32, -scale, scale)

    w_concat = jax.random.uniform(ks[5], (H, 2 * H), jnp.float32, -scale, scale)
    b_concat = jax.random.uniform(ks[6], (H,), jnp.float32, -scale, scale)
    w_out = jax.random.uniform(ks[7], (O, H), jnp.float32, -scale, scale)
    b_out = jax.random.uniform(ks[8], (O,), jnp.float32, -scale, scale)

    # Fused gate weight: gates = [x, h] @ [W_ih^T ; W_hh^T]   -> (L, 2H, 4H), bf16.
    w_cat = jnp.concatenate([jnp.transpose(w_ih, (0, 2, 1)),
                             jnp.transpose(w_hh, (0, 2, 1))], axis=1)

    return {
        "embedding": embedding,                                     # (O, H)  f32
        "w_cat": w_cat.astype(jnp.bfloat16),                        # (L, 2H, 4H)
        "bias": (b_ih + b_hh).reshape(L, 1, 4 * H),                 # (L, 1, 4H) f32
        "w_concat_t": jnp.transpose(w_concat).astype(jnp.bfloat16),  # (2H, H)
        "b_concat": b_concat.reshape(1, H),                         # (1, H) f32
        "w_out_t": jnp.transpose(w_out).astype(jnp.bfloat16),       # (H, O)
        "b_out": b_out.reshape(1, O),                               # (1, O) f32
    }


def _reference_forward(tokens, last_hidden, encoder_outputs, params):
    """Pure-JAX reference mirroring the kernel's numerics (eval mode, bf16 weights)."""
    h0, c0 = last_hidden
    L, B, H = h0.shape
    f32 = jnp.float32

    x = jnp.take(params["embedding"], tokens, axis=0)               # (B, H)
    h_new, c_new = [], []
    for l in range(L):
        xh = jnp.concatenate([x, h0[l]], axis=-1).astype(jnp.bfloat16).astype(f32)
        gates = xh @ params["w_cat"][l].astype(f32) + params["bias"][l]
        i_g = jax.nn.sigmoid(gates[:, 0 * H:1 * H])
        f_g = jax.nn.sigmoid(gates[:, 1 * H:2 * H])
        g_g = jnp.tanh(gates[:, 2 * H:3 * H])
        o_g = jax.nn.sigmoid(gates[:, 3 * H:4 * H])
        c_l = f_g * c0[l] + i_g * g_g
        h_l = o_g * jnp.tanh(c_l)
        h_new.append(h_l)
        c_new.append(c_l)
        x = h_l

    enc = jnp.transpose(encoder_outputs, (1, 0, 2))                 # (B, S, H)
    scores = jnp.sum(x[:, None, :] * enc, axis=-1)                  # (B, S)
    m = jnp.max(scores, axis=-1, keepdims=True)
    e = jnp.exp(scores - m)
    attn_w = e / jnp.sum(e, axis=-1, keepdims=True)
    context = jnp.sum(attn_w[:, :, None] * enc, axis=1)             # (B, H)

    cat = jnp.concatenate([x, context], axis=-1).astype(jnp.bfloat16).astype(f32)
    concat_out = jnp.tanh(cat @ params["w_concat_t"].astype(f32) + params["b_concat"])
    logits = (concat_out.astype(jnp.bfloat16).astype(f32) @ params["w_out_t"].astype(f32)
              + params["b_out"])
    return logits, (jnp.stack(h_new), jnp.stack(c_new)), attn_w


if __name__ == "__main__":
    BATCH = 8
    HIDDEN = 128
    OUTPUT = 256
    NLAYERS = 2
    SRC_LEN = 16

    key = jax.random.PRNGKey(0)
    k_par, k_tok, k_msg, k_enc = jax.random.split(key, 4)

    params = init_params(k_par, HIDDEN, OUTPUT, NLAYERS)
    tokens = jax.random.randint(k_tok, (BATCH,), 0, OUTPUT, dtype=jnp.int32)

    # initHidden(encoder_message): expand (B, H) message across layers for both h and c.
    encoder_message = jax.random.normal(k_msg, (BATCH, HIDDEN), jnp.float32)
    h0 = jnp.broadcast_to(encoder_message[None], (NLAYERS, BATCH, HIDDEN))
    last_hidden = (h0, h0)

    encoder_outputs = jax.random.normal(k_enc, (SRC_LEN, BATCH, HIDDEN), jnp.float32)

    logits, (h_new, c_new), attn_w = attn_decoder_rnn_forward(
        tokens, last_hidden, encoder_outputs, params)
    jax.block_until_ready((logits, h_new, c_new, attn_w))

    ref_logits, (ref_h, ref_c), ref_w = _reference_forward(
        tokens, last_hidden, encoder_outputs, params)

    np.testing.assert_allclose(np.asarray(logits), np.asarray(ref_logits), rtol=2e-4, atol=2e-4)
    np.testing.assert_allclose(np.asarray(h_new), np.asarray(ref_h), rtol=2e-4, atol=2e-4)
    np.testing.assert_allclose(np.asarray(c_new), np.asarray(ref_c), rtol=2e-4, atol=2e-4)
    np.testing.assert_allclose(np.asarray(attn_w), np.asarray(ref_w), rtol=2e-4, atol=2e-4)

    print("KERNEL_OK")
</pallas_src>

<mosaic_0001>
module attributes {stable_mosaic.version = 11 : i64} {
  func.func @_attn_decoder_step_kernel(%arg0: memref<8xi32, #tpu.memory_space<smem>>, %arg1: memref<256x128xf32, #tpu.memory_space<vmem>>, %arg2: memref<2x8x128xf32, #tpu.memory_space<vmem>>, %arg3: memref<2x8x128xf32, #tpu.memory_space<vmem>>, %arg4: memref<2x256x512xbf16, #tpu.memory_space<vmem>>, %arg5: memref<2x1x512xf32, #tpu.memory_space<vmem>>, %arg6: memref<8x16x128xf32, #tpu.memory_space<vmem>>, %arg7: memref<256x128xbf16, #tpu.memory_space<vmem>>, %arg8: memref<1x128xf32, #tpu.memory_space<vmem>>, %arg9: memref<128x256xbf16, #tpu.memory_space<vmem>>, %arg10: memref<1x256xf32, #tpu.memory_space<vmem>>, %arg11: memref<8x256xf32, #tpu.memory_space<vmem>>, %arg12: memref<2x8x128xf32, #tpu.memory_space<vmem>>, %arg13: memref<2x8x128xf32, #tpu.memory_space<vmem>>, %arg14: memref<8x16xf32, #tpu.memory_space<vmem>>, %arg15: memref<8x128xf32, #tpu.memory_space<vmem>>) attributes {dimension_semantics = [], scalar_prefetch = 0 : i64, scratch_operands = 1 : i64, tpu.core_type = #tpu.core_type<tc>} {
    %c0 = arith.constant 0 : index
    %0 = memref.load %arg0[%c0] : memref<8xi32, #tpu.memory_space<smem>>
    %1 = arith.index_cast %0 : i32 to index
    %c0_0 = arith.constant 0 : index
    %2 = vector.load %arg1[%1, %c0_0] : memref<256x128xf32, #tpu.memory_space<vmem>>, vector<1x128xf32>
    %c0_1 = arith.constant 0 : index
    %c0_2 = arith.constant 0 : index
    %3 = vector.load %arg15[%c0_1, %c0_2] : memref<8x128xf32, #tpu.memory_space<vmem>>, vector<1x128xf32>
    tpu.vector_store %arg15[%c0_1, %c0_2], %2 {strides = array<i32>} : memref<8x128xf32, #tpu.memory_space<vmem>>, vector<1x128xf32>,
    %c1 = arith.constant 1 : index
    %4 = memref.load %arg0[%c1] : memref<8xi32, #tpu.memory_space<smem>>
    %5 = arith.index_cast %4 : i32 to index
    %c0_3 = arith.constant 0 : index
    %6 = vector.load %arg1[%5, %c0_3] : memref<256x128xf32, #tpu.memory_space<vmem>>, vector<1x128xf32>
    %c1_4 = arith.constant 1 : index
    %c0_5 = arith.constant 0 : index
    %7 = vector.load %arg15[%c1_4, %c0_5] : memref<8x128xf32, #tpu.memory_space<vmem>>, vector<1x128xf32>
    tpu.vector_store %arg15[%c1_4, %c0_5], %6 {strides = array<i32>} : memref<8x128xf32, #tpu.memory_space<vmem>>, vector<1x128xf32>,
    %c2 = arith.constant 2 : index
    %8 = memref.load %arg0[%c2] : memref<8xi32, #tpu.memory_space<smem>>
    %9 = arith.index_cast %8 : i32 to index
    %c0_6 = arith.constant 0 : index
    %10 = vector.load %arg1[%9, %c0_6] : memref<256x128xf32, #tpu.memory_space<vmem>>, vector<1x128xf32>
    %c2_7 = arith.constant 2 : index
    %c0_8 = arith.constant 0 : index
    %11 = vector.load %arg15[%c2_7, %c0_8] : memref<8x128xf32, #tpu.memory_space<vmem>>, vector<1x128xf32>
    tpu.vector_store %arg15[%c2_7, %c0_8], %10 {strides = array<i32>} : memref<8x128xf32, #tpu.memory_space<vmem>>, vector<1x128xf32>,
    %c3 = arith.constant 3 : index
    %12 = memref.load %arg0[%c3] : memref<8xi32, #tpu.memory_space<smem>>
    %13 = arith.index_cast %12 : i32 to index
    %c0_9 = arith.constant 0 : index
    %14 = vector.load %arg1[%13, %c0_9] : memref<256x128xf32, #tpu.memory_space<vmem>>, vector<1x128xf32>
    %c3_10 = arith.constant 3 : index
    %c0_11 = arith.constant 0 : index
    %15 = vector.load %arg15[%c3_10, %c0_11] : memref<8x128xf32, #tpu.memory_space<vmem>>, vector<1x128xf32>
    tpu.vector_store %arg15[%c3_10, %c0_11], %14 {strides = array<i32>} : memref<8x128xf32, #tpu.memory_space<vmem>>, vector<1x128xf32>,
    %c4 = arith.constant 4 : index
    %16 = memref.load %arg0[%c4] : memref<8xi32, #tpu.memory_space<smem>>
    %17 = arith.index_cast %16 : i32 to index
    %c0_12 = arith.constant 0 : index
    %18 = vector.load %arg1[%17, %c0_12] : memref<256x128xf32, #tpu.memory_space<vmem>>, vector<1x128xf32>
    %c4_13 = arith.constant 4 : index
    %c0_14 = arith.constant 0 : index
    %19 = vector.load %arg15[%c4_13, %c0_14] : memref<8x128xf32, #tpu.memory_space<vmem>>, vector<1x128xf32>
    tpu.vector_store %arg15[%c4_13, %c0_14], %18 {strides = array<i32>} : memref<8x128xf32, #tpu.memory_space<vmem>>, vector<1x128xf32>,
    %c5 = arith.constant 5 : index
    %20 = memref.load %arg0[%c5] : memref<8xi32, #tpu.memory_space<smem>>
    %21 = arith.index_cast %20 : i32 to index
    %c0_15 = arith.constant 0 : index
    %22 = vector.load %arg1[%21, %c0_15] : memref<256x128xf32, #tpu.memory_space<vmem>>, vector<1x128xf32>
    %c5_16 = arith.constant 5 : index
    %c0_17 = arith.constant 0 : index
    %23 = vector.load %arg15[%c5_16, %c0_17] : memref<8x128xf32, #tpu.memory_space<vmem>>, vector<1x128xf32>
    tpu.vector_store %arg15[%c5_16, %c0_17], %22 {strides = array<i32>} : memref<8x128xf32, #tpu.memory_space<vmem>>, vector<1x128xf32>,
    %c6 = arith.constant 6 : index
    %24 = memref.load %arg0[%c6] : memref<8xi32, #tpu.memory_space<smem>>
    %25 = arith.index_cast %24 : i32 to index
    %c0_18 = arith.constant 0 : index
    %26 = vector.load %arg1[%25, %c0_18] : memref<256x128xf32, #tpu.memory_space<vmem>>, vector<1x128xf32>
    %c6_19 = arith.constant 6 : index
    %c0_20 = arith.constant 0 : index
    %27 = vector.load %arg15[%c6_19, %c0_20] : memref<8x128xf32, #tpu.memory_space<vmem>>, vector<1x128xf32>
    tpu.vector_store %arg15[%c6_19, %c0_20], %26 {strides = array<i32>} : memref<8x128xf32, #tpu.memory_space<vmem>>, vector<1x128xf32>,
    %c7 = arith.constant 7 : index
    %28 = memref.load %arg0[%c7] : memref<8xi32, #tpu.memory_space<smem>>
    %29 = arith.index_cast %28 : i32 to index
    %c0_21 = arith.constant 0 : index
    %30 = vector.load %arg1[%29, %c0_21] : memref<256x128xf32, #tpu.memory_space<vmem>>, vector<1x128xf32>
    %c7_22 = arith.constant 7 : index
    %c0_23 = arith.constant 0 : index
    %31 = vector.load %arg15[%c7_22, %c0_23] : memref<8x128xf32, #tpu.memory_space<vmem>>, vector<1x128xf32>
    tpu.vector_store %arg15[%c7_22, %c0_23], %30 {strides = array<i32>} : memref<8x128xf32, #tpu.memory_space<vmem>>, vector<1x128xf32>,
    %c0_24 = arith.constant 0 : index
    %c0_25 = arith.constant 0 : index
    %32 = vector.load %arg15[%c0_24, %c0_25] : memref<8x128xf32, #tpu.memory_space<vmem>>, vector<8x128xf32>
    %c0_26 = arith.constant 0 : index
    %c0_27 = arith.constant 0 : index
    %c0_28 = arith.constant 0 : index
    %33 = vector.load %arg2[%c0_26, %c0_27, %c0_28] : memref<2x8x128xf32, #tpu.memory_space<vmem>>, vector<1x8x128xf32>
    %34 = vector.shape_cast %33 : vector<1x8x128xf32> to vector<8x128xf32>
    %c0_29 = arith.constant 0 : index
    %c0_30 = arith.constant 0 : index
    %c0_31 = arith.constant 0 : index
    %35 = vector.load %arg3[%c0_29, %c0_30, %c0_31] : memref<2x8x128xf32, #tpu.memory_space<vmem>>, vector<1x8x128xf32>
    %36 = vector.shape_cast %35 : vector<1x8x128xf32> to vector<8x128xf32>
    %37 = tpu.concatenate %32, %34 in 1 : vector<8x128xf32>, vector<8x128xf32> -> vector<8x256xf32>
    %38 = arith.truncf %37 : vector<8x256xf32> to vector<8x256xbf16>
    %c0_32 = arith.constant 0 : index
    %c0_33 = arith.constant 0 : index
    %c0_34 = arith.constant 0 : index
    %39 = vector.load %arg4[%c0_32, %c0_33, %c0_34] : memref<2x256x512xbf16, #tpu.memory_space<vmem>>, vector<1x256x512xbf16>
    %40 = vector.shape_cast %39 : vector<1x256x512xbf16> to vector<256x512xbf16>
    %cst = arith.constant dense<0.000000e+00> : vector<8x512xf32>
    %41 = tpu.matmul %38, %40, %cst {dimension_numbers = #tpu.dot_dimension_numbers<[1], [0], [0], [1], [0, 0, 1, 1], [], []>} : vector<8x256xbf16>, vector<256x512xbf16>, vector<8x512xf32> -> vector<8x512xf32>
    %c0_35 = arith.constant 0 : index
    %c0_36 = arith.constant 0 : index
    %c0_37 = arith.constant 0 : index
    %42 = vector.load %arg5[%c0_35, %c0_36, %c0_37] : memref<2x1x512xf32, #tpu.memory_space<vmem>>, vector<1x1x512xf32>
    %43 = vector.shape_cast %42 : vector<1x1x512xf32> to vector<1x512xf32>
    %44 = vector.broadcast %43 : vector<1x512xf32> to vector<8x512xf32>
    %45 = arith.addf %41, %44 : vector<8x512xf32>
    %46 = vector.extract_strided_slice %45 {offsets = [0, 0], sizes = [8, 128], strides = [1, 1]} : vector<8x512xf32> to vector<8x128xf32>
    %47 = arith.negf %46 : vector<8x128xf32>
    %48 = math.exp %47 : vector<8x128xf32>
    %cst_38 = arith.constant 1.000000e+00 : f32
    %49 = vector.broadcast %cst_38 : f32 to vector<8x128xf32>
    %50 = arith.addf %49, %48 : vector<8x128xf32>
    %51 = arith.divf %49, %50 : vector<8x128xf32>
    %52 = vector.extract_strided_slice %45 {offsets = [0, 128], sizes = [8, 128], strides = [1, 1]} : vector<8x512xf32> to vector<8x128xf32>
    %53 = arith.negf %52 : vector<8x128xf32>
    %54 = math.exp %53 : vector<8x128xf32>
    %cst_39 = arith.constant 1.000000e+00 : f32
    %55 = vector.broadcast %cst_39 : f32 to vector<8x128xf32>
    %56 = arith.addf %55, %54 : vector<8x128xf32>
    %57 = arith.divf %55, %56 : vector<8x128xf32>
    %58 = vector.extract_strided_slice %45 {offsets = [0, 256], sizes = [8, 128], strides = [1, 1]} : vector<8x512xf32> to vector<8x128xf32>
    %59 = math.tanh %58 : vector<8x128xf32>
    %60 = vector.extract_strided_slice %45 {offsets = [0, 384], sizes = [8, 128], strides = [1, 1]} : vector<8x512xf32> to vector<8x128xf32>
    %61 = arith.negf %60 : vector<8x128xf32>
    %62 = math.exp %61 : vector<8x128xf32>
    %cst_40 = arith.constant 1.000000e+00 : f32
    %63 = vector.broadcast %cst_40 : f32 to vector<8x128xf32>
    %64 = arith.addf %63, %62 : vector<8x128xf32>
    %65 = arith.divf %63, %64 : vector<8x128xf32>
    %66 = arith.mulf %57, %36 : vector<8x128xf32>
    %67 = arith.mulf %51, %59 : vector<8x128xf32>
    %68 = arith.addf %66, %67 : vector<8x128xf32>
    %69 = math.tanh %68 : vector<8x128xf32>
    %70 = arith.mulf %65, %69 : vector<8x128xf32>
    %c0_41 = arith.constant 0 : index
    %c0_42 = arith.constant 0 : index
    %c0_43 = arith.constant 0 : index
    %71 = vector.load %arg12[%c0_41, %c0_42, %c0_43] : memref<2x8x128xf32, #tpu.memory_space<vmem>>, vector<1x8x128xf32>
    %72 = vector.shape_cast %71 : vector<1x8x128xf32> to vector<8x128xf32>
    %73 = vector.shape_cast %70 : vector<8x128xf32> to vector<1x8x128xf32>
    tpu.vector_store %arg12[%c0_41, %c0_42, %c0_43], %73 {strides = array<i32>} : memref<2x8x128xf32, #tpu.memory_space<vmem>>, vector<1x8x128xf32>,
    %c0_44 = arith.constant 0 : index
    %c0_45 = arith.constant 0 : index
    %c0_46 = arith.constant 0 : index
    %74 = vector.load %arg13[%c0_44, %c0_45, %c0_46] : memref<2x8x128xf32, #tpu.memory_space<vmem>>, vector<1x8x128xf32>
    %75 = vector.shape_cast %74 : vector<1x8x128xf32> to vector<8x128xf32>
    %76 = vector.shape_cast %68 : vector<8x128xf32> to vector<1x8x128xf32>
    tpu.vector_store %arg13[%c0_44, %c0_45, %c0_46], %76 {strides = array<i32>} : memref<2x8x128xf32, #tpu.memory_space<vmem>>, vector<1x8x128xf32>,
    %c1_47 = arith.constant 1 : index
    %c0_48 = arith.constant 0 : index
    %c0_49 = arith.constant 0 : index
    %77 = vector.load %arg2[%c1_47, %c0_48, %c0_49] : memref<2x8x128xf32, #tpu.memory_space<vmem>>, vector<1x8x128xf32>
    %78 = vector.shape_cast %77 : vector<1x8x128xf32> to vector<8x128xf32>
    %c1_50 = arith.constant 1 : index
    %c0_51 = arith.constant 0 : index
    %c0_52 = arith.constant 0 : index
    %79 = vector.load %arg3[%c1_50, %c0_51, %c0_52] : memref<2x8x128xf32, #tpu.memory_space<vmem>>, vector<1x8x128xf32>
    %80 = vector.shape_cast %79 : vector<1x8x128xf32> to vector<8x128xf32>
    %81 = tpu.concatenate %70, %78 in 1 : vector<8x128xf32>, vector<8x128xf32> -> vector<8x256xf32>
    %82 = arith.truncf %81 : vector<8x256xf32> to vector<8x256xbf16>
    %c1_53 = arith.constant 1 : index
    %c0_54 = arith.constant 0 : index
    %c0_55 = arith.constant 0 : index
    %83 = vector.load %arg4[%c1_53, %c0_54, %c0_55] : memref<2x256x512xbf16, #tpu.memory_space<vmem>>, vector<1x256x512xbf16>
    %84 = vector.shape_cast %83 : vector<1x256x512xbf16> to vector<256x512xbf16>
    %cst_56 = arith.constant dense<0.000000e+00> : vector<8x512xf32>
    %85 = tpu.matmul %82, %84, %cst_56 {dimension_numbers = #tpu.dot_dimension_numbers<[1], [0], [0], [1], [0, 0, 1, 1], [], []>} : vector<8x256xbf16>, vector<256x512xbf16>, vector<8x512xf32> -> vector<8x512xf32>
    %c1_57 = arith.constant 1 : index
    %c0_58 = arith.constant 0 : index
    %c0_59 = arith.constant 0 : index
    %86 = vector.load %arg5[%c1_57, %c0_58, %c0_59] : memref<2x1x512xf32, #tpu.memory_space<vmem>>, vector<1x1x512xf32>
    %87 = vector.shape_cast %86 : vector<1x1x512xf32> to vector<1x512xf32>
    %88 = vector.broadcast %87 : vector<1x512xf32> to vector<8x512xf32>
    %89 = arith.addf %85, %88 : vector<8x512xf32>
    %90 = vector.extract_strided_slice %89 {offsets = [0, 0], sizes = [8, 128], strides = [1, 1]} : vector<8x512xf32> to vector<8x128xf32>
    %91 = arith.negf %90 : vector<8x128xf32>
    %92 = math.exp %91 : vector<8x128xf32>
    %cst_60 = arith.constant 1.000000e+00 : f32
    %93 = vector.broadcast %cst_60 : f32 to vector<8x128xf32>
    %94 = arith.addf %93, %92 : vector<8x128xf32>
    %95 = arith.divf %93, %94 : vector<8x128xf32>
    %96 = vector.extract_strided_slice %89 {offsets = [0, 128], sizes = [8, 128], strides = [1, 1]} : vector<8x512xf32> to vector<8x128xf32>
    %97 = arith.negf %96 : vector<8x128xf32>
    %98 = math.exp %97 : vector<8x128xf32>
    %cst_61 = arith.constant 1.000000e+00 : f32
    %99 = vector.broadcast %cst_61 : f32 to vector<8x128xf32>
    %100 = arith.addf %99, %98 : vector<8x128xf32>
    %101 = arith.divf %99, %100 : vector<8x128xf32>
    %102 = vector.extract_strided_slice %89 {offsets = [0, 256], sizes = [8, 128], strides = [1, 1]} : vector<8x512xf32> to vector<8x128xf32>
    %103 = math.tanh %102 : vector<8x128xf32>
    %104 = vector.extract_strided_slice %89 {offsets = [0, 384], sizes = [8, 128], strides = [1, 1]} : vector<8x512xf32> to vector<8x128xf32>
    %105 = arith.negf %104 : vector<8x128xf32>
    %106 = math.exp %105 : vector<8x128xf32>
    %cst_62 = arith.constant 1.000000e+00 : f32
    %107 = vector.broadcast %cst_62 : f32 to vector<8x128xf32>
    %108 = arith.addf %107, %106 : vector<8x128xf32>
    %109 = arith.divf %107, %108 : vector<8x128xf32>
    %110 = arith.mulf %101, %80 : vector<8x128xf32>
    %111 = arith.mulf %95, %103 : vector<8x128xf32>
    %112 = arith.addf %110, %111 : vector<8x128xf32>
    %113 = math.tanh %112 : vector<8x128xf32>
    %114 = arith.mulf %109, %113 : vector<8x128xf32>
    %c1_63 = arith.constant 1 : index
    %c0_64 = arith.constant 0 : index
    %c0_65 = arith.constant 0 : index
    %115 = vector.load %arg12[%c1_63, %c0_64, %c0_65] : memref<2x8x128xf32, #tpu.memory_space<vmem>>, vector<1x8x128xf32>
    %116 = vector.shape_cast %115 : vector<1x8x128xf32> to vector<8x128xf32>
    %117 = vector.shape_cast %114 : vector<8x128xf32> to vector<1x8x128xf32>
    tpu.vector_store %arg12[%c1_63, %c0_64, %c0_65], %117 {strides = array<i32>} : memref<2x8x128xf32, #tpu.memory_space<vmem>>, vector<1x8x128xf32>,
    %c1_66 = arith.constant 1 : index
    %c0_67 = arith.constant 0 : index
    %c0_68 = arith.constant 0 : index
    %118 = vector.load %arg13[%c1_66, %c0_67, %c0_68] : memref<2x8x128xf32, #tpu.memory_space<vmem>>, vector<1x8x128xf32>
    %119 = vector.shape_cast %118 : vector<1x8x128xf32> to vector<8x128xf32>
    %120 = vector.shape_cast %112 : vector<8x128xf32> to vector<1x8x128xf32>
    tpu.vector_store %arg13[%c1_66, %c0_67, %c0_68], %120 {strides = array<i32>} : memref<2x8x128xf32, #tpu.memory_space<vmem>>, vector<1x8x128xf32>,
    %c0_69 = arith.constant 0 : index
    %c0_70 = arith.constant 0 : index
    %c0_71 = arith.constant 0 : index
    %121 = vector.load %arg6[%c0_69, %c0_70, %c0_71] : memref<8x16x128xf32, #tpu.memory_space<vmem>>, vector<8x16x128xf32>
    %122 = vector.shape_cast %114 : vector<8x128xf32> to vector<8x1x128xf32>
    %123 = vector.broadcast %122 : vector<8x1x128xf32> to vector<8x16x128xf32>
    %124 = arith.mulf %123, %121 : vector<8x16x128xf32>
    %cst_72 = arith.constant dense<0.000000e+00> : vector<8x16xf32>
    %125 = vector.multi_reduction <add>, %124, %cst_72 [2] : vector<8x16x128xf32> to vector<8x16xf32>
    %cst_73 = arith.constant dense<0xFF800000> : vector<8xf32>
    %126 = vector.multi_reduction <maximumf>, %125, %cst_73 [1] : vector<8x16xf32> to vector<8xf32>
    %127 = vector.shape_cast %126 : vector<8xf32> to vector<8x1xf32>
    %128 = vector.broadcast %127 : vector<8x1xf32> to vector<8x16xf32>
    %129 = arith.subf %125, %128 : vector<8x16xf32>
    %130 = math.exp %129 : vector<8x16xf32>
    %cst_74 = arith.constant dense<0.000000e+00> : vector<8xf32>
    %131 = vector.multi_reduction <add>, %130, %cst_74 [1] : vector<8x16xf32> to vector<8xf32>
    %132 = vector.shape_cast %131 : vector<8xf32> to vector<8x1xf32>
    %133 = vector.broadcast %132 : vector<8x1xf32> to vector<8x16xf32>
    %134 = arith.divf %130, %133 : vector<8x16xf32>
    %c0_75 = arith.constant 0 : index
    %c0_76 = arith.constant 0 : index
    %135 = vector.load %arg14[%c0_75, %c0_76] : memref<8x16xf32, #tpu.memory_space<vmem>>, vector<8x16xf32>
    tpu.vector_store %arg14[%c0_75, %c0_76], %134 {strides = array<i32>} : memref<8x16xf32, #tpu.memory_space<vmem>>, vector<8x16xf32>,
    %136 = vector.shape_cast %134 : vector<8x16xf32> to vector<8x16x1xf32>
    %137 = vector.broadcast %136 : vector<8x16x1xf32> to vector<8x16x128xf32>
    %138 = arith.mulf %137, %121 : vector<8x16x128xf32>
    %cst_77 = arith.constant dense<0.000000e+00> : vector<8x128xf32>
    %139 = vector.multi_reduction <add>, %138, %cst_77 [1] : vector<8x16x128xf32> to vector<8x128xf32>
    %140 = tpu.concatenate %114, %139 in 1 : vector<8x128xf32>, vector<8x128xf32> -> vector<8x256xf32>
    %141 = arith.truncf %140 : vector<8x256xf32> to vector<8x256xbf16>
    %c0_78 = arith.constant 0 : index
    %c0_79 = arith.constant 0 : index
    %142 = vector.load %arg7[%c0_78, %c0_79] : memref<256x128xbf16, #tpu.memory_space<vmem>>, vector<256x128xbf16>
    %cst_80 = arith.constant dense<0.000000e+00> : vector<8x128xf32>
    %143 = tpu.matmul %141, %142, %cst_80 {dimension_numbers = #tpu.dot_dimension_numbers<[1], [0], [0], [1], [0, 0, 1, 1], [], []>} : vector<8x256xbf16>, vector<256x128xbf16>, vector<8x128xf32> -> vector<8x128xf32>
    %c0_81 = arith.constant 0 : index
    %c0_82 = arith.constant 0 : index
    %144 = vector.load %arg8[%c0_81, %c0_82] : memref<1x128xf32, #tpu.memory_space<vmem>>, vector<1x128xf32>
    %145 = vector.broadcast %144 : vector<1x128xf32> to vector<8x128xf32>
    %146 = arith.addf %143, %145 : vector<8x128xf32>
    %147 = math.tanh %146 : vector<8x128xf32>
    %148 = arith.truncf %147 : vector<8x128xf32> to vector<8x128xbf16>
    %c0_83 = arith.constant 0 : index
    %c0_84 = arith.constant 0 : index
    %149 = vector.load %arg9[%c0_83, %c0_84] : memref<128x256xbf16, #tpu.memory_space<vmem>>, vector<128x256xbf16>
    %cst_85 = arith.constant dense<0.000000e+00> : vector<8x256xf32>
    %150 = tpu.matmul %148, %149, %cst_85 {dimension_numbers = #tpu.dot_dimension_numbers<[1], [0], [0], [1], [0, 0, 1, 1], [], []>} : vector<8x128xbf16>, vector<128x256xbf16>, vector<8x256xf32> -> vector<8x256xf32>
    %c0_86 = arith.constant 0 : index
    %c0_87 = arith.constant 0 : index
    %151 = vector.load %arg10[%c0_86, %c0_87] : memref<1x256xf32, #tpu.memory_space<vmem>>, vector<1x256xf32>
    %152 = vector.broadcast %151 : vector<1x256xf32> to vector<8x256xf32>
    %153 = arith.addf %150, %152 : vector<8x256xf32>
    %c0_88 = arith.constant 0 : index
    %c0_89 = arith.constant 0 : index
    %154 = vector.load %arg11[%c0_88, %c0_89] : memref<8x256xf32, #tpu.memory_space<vmem>>, vector<8x256xf32>
    tpu.vector_store %arg11[%c0_88, %c0_89], %153 {strides = array<i32>} : memref<8x256xf32, #tpu.memory_space<vmem>>, vector<8x256xf32>,
    return
  }
}

</mosaic_0001>

<llo_original>
// kernel: tpu_custom_call.1
$region0: #{tpu_custom_call.1}
  #allocation0 [shape = 'u32[]', space=smem, size = 0x4, offset = 0x4, fixed_abs, tag = 'smem constant byte address 0x4 - core index']
  #allocation1 [shape = 'u32[72,128]{1,0:T(1,128)}', space=vmem, size = 0x9000, scoped, tag = 'internal scratch']
  #allocation2 [shape = 'f32[8,128]{1,0:T(8,128)}', space=vmem, size = 0x1000, scoped, tag = 'scratch operand']
  %s0 = inlined_call_operand.hbm [shape: s32[8], index: 0, kind: input, shape index: {}]
  %s1 = inlined_call_operand.hbm [shape: f32[256,128], index: 1, kind: input, shape index: {}]
  %s2 = inlined_call_operand.hbm [shape: f32[2,8,128], index: 2, kind: input, shape index: {}]
  %s3 = inlined_call_operand.hbm [shape: f32[2,8,128], index: 3, kind: input, shape index: {}]
  %s4 = inlined_call_operand.hbm [shape: bf16[2,256,512], index: 4, kind: input, shape index: {}]
  %s5 = inlined_call_operand.hbm [shape: f32[2,1,512], index: 5, kind: input, shape index: {}]
  %s6 = inlined_call_operand.hbm [shape: f32[8,16,128], index: 6, kind: input, shape index: {}]
  %s7 = inlined_call_operand.hbm [shape: bf16[256,128], index: 7, kind: input, shape index: {}]
  %s8 = inlined_call_operand.vmem [shape: f32[1,128], index: 8, kind: input, shape index: {}]
  %s9 = inlined_call_operand.hbm [shape: bf16[128,256], index: 9, kind: input, shape index: {}]
  %s10 = inlined_call_operand.vmem [shape: f32[1,256], index: 10, kind: input, shape index: {}]
  %s11 = inlined_call_operand.hbm [shape: f32[8,256], index: 11, kind: output, shape index: {0}]
  %s12 = inlined_call_operand.hbm [shape: f32[2,8,128], index: 12, kind: output, shape index: {1}]
  %s13 = inlined_call_operand.hbm [shape: f32[2,8,128], index: 13, kind: output, shape index: {2}]
  %s14 = inlined_call_operand.hbm [shape: f32[8,16], index: 14, kind: output, shape index: {3}]
  %15 = xla_tuple %s11, %s12, %s13, %s14
  %s16 = sld [smem:[#allocation0]]
  $region114: #{tpu_custom_call.1} parent=0
    _
  %s18 = ssub.s32 1, %s16
  %s19 = scalar_select 0, %s18, %s16
  $region1: #{tpu_custom_call.1} parent=0
    #allocation3 [shape = 'u8[512]{0}', space=smem, size = 0x200, scoped, tag = 'input window, operand 0, single buffered']
    #allocation4 [shape = 's32[1]{0}', space=sflag, size = 0x4, scoped, tag = 'scoped memory for tpu_custom_call.1']
    #allocation5 [shape = 's32[1]{0}', space=sflag, size = 0x4, scoped, tag = 'scoped memory for tpu_custom_call.1']
    #allocation6 [shape = 's32[1]{0}', space=sflag, size = 0x4, scoped, tag = 'scoped memory for tpu_custom_call.1']
    #allocation7 [shape = 'u8[131072]{0}', space=vmem, size = 0x20000, scoped, tag = 'input window, operand 1, single buffered']
    #allocation8 [shape = 'u8[8192]{0}', space=vmem, size = 0x2000, scoped, tag = 'input window, operand 2, single buffered']
    #allocation9 [shape = 's32[1]{0}', space=sflag, size = 0x4, scoped, tag = 'scoped memory for tpu_custom_call.1']
    #allocation10 [shape = 'u8[8192]{0}', space=vmem, size = 0x2000, scoped, tag = 'input window, operand 3, single buffered']
    #allocation11 [shape = 'u8[524288]{0}', space=vmem, size = 0x80000, scoped, tag = 'input window, operand 4, single buffered']
    #allocation12 [shape = 's32[1]{0}', space=sflag, size = 0x4, scoped, tag = 'scoped memory for tpu_custom_call.1']
    #allocation13 [shape = 'u8[4096]{0}', space=vmem, size = 0x1000, scoped, tag = 'input window, operand 5, single buffered']
    #allocation14 [shape = 'u8[65536]{0}', space=vmem, size = 0x10000, scoped, tag = 'input window, operand 6, single buffered']
    #allocation15 [shape = 's32[1]{0}', space=sflag, size = 0x4, scoped, tag = 'scoped memory for tpu_custom_call.1']
    #allocation16 [shape = 'u8[65536]{0}', space=vmem, size = 0x10000, scoped, tag = 'input window, operand 7, single buffered']
    #allocation17 [shape = 'u8[65536]{0}', space=vmem, size = 0x10000, scoped, tag = 'input window, operand 9, single buffered']
    #allocation18 [shape = 's32[1]{0}', space=sflag, size = 0x4, scoped, tag = 'scoped memory for tpu_custom_call.1']
    #allocation19 [shape = 'u8[8192]{0}', space=vmem, size = 0x2000, scoped, tag = 'output window, operand 0, single buffered']
    #allocation20 [shape = 'u8[8192]{0}', space=vmem, size = 0x2000, scoped, tag = 'output window, operand 1, single buffered']
    #allocation21 [shape = 's32[1]{0}', space=sflag, size = 0x4, scoped, tag = 'scoped memory for tpu_custom_call.1']
    #allocation22 [shape = 'u8[8192]{0}', space=vmem, size = 0x2000, scoped, tag = 'output window, operand 2, single buffered']
    #allocation23 [shape = 'u8[4096]{0}', space=vmem, size = 0x1000, scoped, tag = 'output window, operand 3, single buffered']
    #allocation24 [shape = 's32[1]{0}', space=sflag, size = 0x4, scoped, tag = 'scoped memory for tpu_custom_call.1']
    %20 = vsyncpa [#allocation6], 0
    %21 = vsyncpa [#allocation4], 0
    %22 = vsyncpa [#allocation9], 0
    %23 = vsyncpa [#allocation12], 0
    %24 = vsyncpa [#allocation15], 0
    %25 = vsyncpa [#allocation18], 0
    %26 = vsyncpa [#allocation5], 0
    %27 = vsyncpa [#allocation21], 0
    %28 = vsyncpa [#allocation24], 0
    // Predicated region
    $region2: #{tpu_custom_call.1} parent=1 // pred_check
      _
    $region3: #{tpu_custom_call.1} parent=1 // pred_check_branch
      %30 = sbr.rel (0) target = $region5
    $region4: #{tpu_custom_call.1} parent=1 // pred_region
      %32 = vsyncadd [#allocation6], 0
      %s34 = sshll.u32 %s0, 4
      %s35 = int_to_ptr.hbm [resolvable:$true] %s34
      %37 = dma.hbm_to_smem %s35, 16, [#allocation3], [#allocation6]
    $region5: #{tpu_custom_call.1} parent=1 // pred_fallthru
      _
    // Predicated region
    $region6: #{tpu_custom_call.1} parent=1 // pred_check
      _
    $region7: #{tpu_custom_call.1} parent=1 // pred_check_branch
      %39 = sbr.rel (0) target = $region9
    $region8: #{tpu_custom_call.1} parent=1 // pred_region
      %41 = vsyncadd [#allocation4], 0
      %s42 = sshll.u32 %s1, 4
      %s43 = int_to_ptr.hbm [resolvable:$true] %s42
      %s44 = sshll.u32 [#allocation7], 4
      %s45 = int_to_ptr.vmem [resolvable:$true] %s44
      %50 = dma.hbm_to_vmem [thread:$0]  %s43, 4096, %s45, [#allocation4], 128, 128, 8
    $region9: #{tpu_custom_call.1} parent=1 // pred_fallthru
      _
    // Predicated region
    $region10: #{tpu_custom_call.1} parent=1 // pred_check
      _
    $region11: #{tpu_custom_call.1} parent=1 // pred_check_branch
      %52 = sbr.rel (0) target = $region13
    $region12: #{tpu_custom_call.1} parent=1 // pred_region
      %54 = vsyncadd [#allocation9], 0
      %s55 = sshll.u32 %s2, 4
      %s56 = int_to_ptr.hbm [resolvable:$true] %s55
      %s57 = sshll.u32 [#allocation8], 4
      %s58 = int_to_ptr.vmem [resolvable:$true] %s57
      %63 = dma.hbm_to_vmem [thread:$0]  %s56, 256, %s58, [#allocation9], 128, 128, 8
    $region13: #{tpu_custom_call.1} parent=1 // pred_fallthru
      _
    // Predicated region
    $region14: #{tpu_custom_call.1} parent=1 // pred_check
      _
    $region15: #{tpu_custom_call.1} parent=1 // pred_check_branch
      %65 = sbr.rel (0) target = $region17
    $region16: #{tpu_custom_call.1} parent=1 // pred_region
      %67 = vsyncadd [#allocation9], 0
      %s68 = sshll.u32 %s3, 4
      %s69 = int_to_ptr.hbm [resolvable:$true] %s68
      %s70 = sshll.u32 [#allocation10], 4
      %s71 = int_to_ptr.vmem [resolvable:$true] %s70
      %76 = dma.hbm_to_vmem [thread:$0]  %s69, 256, %s71, [#allocation9], 128, 128, 8
    $region17: #{tpu_custom_call.1} parent=1 // pred_fallthru
      _
    // Predicated region
    $region18: #{tpu_custom_call.1} parent=1 // pred_check
      _
    $region19: #{tpu_custom_call.1} parent=1 // pred_check_branch
      %78 = sbr.rel (0) target = $region21
    $region20: #{tpu_custom_call.1} parent=1 // pred_region
      %80 = vsyncadd [#allocation12], 0
      %s81 = sshll.u32 %s4, 4
      %s82 = int_to_ptr.hbm [resolvable:$true] %s81
      %s83 = sshll.u32 [#allocation11], 4
      %s84 = int_to_ptr.vmem [resolvable:$true] %s83
      %89 = dma.hbm_to_vmem [thread:$0]  %s82, 16384, %s84, [#allocation12], 256, 256, 16
    $region21: #{tpu_custom_call.1} parent=1 // pred_fallthru
      _
    // Predicated region
    $region22: #{tpu_custom_call.1} parent=1 // pred_check
      _
    $region23: #{tpu_custom_call.1} parent=1 // pred_check_branch
      %91 = sbr.rel (0) target = $region25
    $region24: #{tpu_custom_call.1} parent=1 // pred_region
      %93 = vsyncadd [#allocation12], 0
      %s94 = sshll.u32 %s5, 4
      %s95 = int_to_ptr.hbm [resolvable:$true] %s94
      %s96 = sshll.u32 [#allocation13], 4
      %s97 = int_to_ptr.vmem [resolvable:$true] %s96
      %102 = dma.hbm_to_vmem [thread:$0]  %s95, 128, %s97, [#allocation12], 64, 64, 4
    $region25: #{tpu_custom_call.1} parent=1 // pred_fallthru
      _
    // Predicated region
    $region26: #{tpu_custom_call.1} parent=1 // pred_check
      _
    $region27: #{tpu_custom_call.1} parent=1 // pred_check_branch
      %104 = sbr.rel (0) target = $region29
    $region28: #{tpu_custom_call.1} parent=1 // pred_region
      %106 = vsyncadd [#allocation15], 0
      %s107 = sshll.u32 %s6, 4
      %s108 = int_to_ptr.hbm [resolvable:$true] %s107
      %s109 = sshll.u32 [#allocation14], 4
      %s110 = int_to_ptr.vmem [resolvable:$true] %s109
      %115 = dma.hbm_to_vmem [thread:$0]  %s108, 2048, %s110, [#allocation15], 128, 128, 8
    $region29: #{tpu_custom_call.1} parent=1 // pred_fallthru
      _
    // Predicated region
    $region30: #{tpu_custom_call.1} parent=1 // pred_check
      _
    $region31: #{tpu_custom_call.1} parent=1 // pred_check_branch
      %117 = sbr.rel (0) target = $region33
    $region32: #{tpu_custom_call.1} parent=1 // pred_region
      %119 = vsyncadd [#allocation15], 0
      %s120 = sshll.u32 %s7, 4
      %s121 = int_to_ptr.hbm [resolvable:$true] %s120
      %s122 = sshll.u32 [#allocation16], 4
      %s123 = int_to_ptr.vmem [resolvable:$true] %s122
      %128 = dma.hbm_to_vmem [thread:$0]  %s121, 2048, %s123, [#allocation15], 64, 64, 4
    $region33: #{tpu_custom_call.1} parent=1 // pred_fallthru
      _
    // Predicated region
    $region34: #{tpu_custom_call.1} parent=1 // pred_check
      _
    $region35: #{tpu_custom_call.1} parent=1 // pred_check_branch
      %130 = sbr.rel (0) target = $region37
    $region36: #{tpu_custom_call.1} parent=1 // pred_region
      _
    $region37: #{tpu_custom_call.1} parent=1 // pred_fallthru
      _
    // Predicated region
    $region38: #{tpu_custom_call.1} parent=1 // pred_check
      _
    $region39: #{tpu_custom_call.1} parent=1 // pred_check_branch
      %132 = sbr.rel (0) target = $region41
    $region40: #{tpu_custom_call.1} parent=1 // pred_region
      %134 = vsyncadd [#allocation18], 0
      %s135 = sshll.u32 %s9, 4
      %s136 = int_to_ptr.hbm [resolvable:$true] %s135
      %s137 = sshll.u32 [#allocation17], 4
      %s138 = int_to_ptr.vmem [resolvable:$true] %s137
      %143 = dma.hbm_to_vmem [thread:$0]  %s136, 2048, %s138, [#allocation18], 128, 128, 8
    $region41: #{tpu_custom_call.1} parent=1 // pred_fallthru
      _
    // Predicated region
    $region42: #{tpu_custom_call.1} parent=1 // pred_check
      _
    $region43: #{tpu_custom_call.1} parent=1 // pred_check_branch
      %145 = sbr.rel (0) target = $region45
    $region44: #{tpu_custom_call.1} parent=1 // pred_region
      _
    $region45: #{tpu_custom_call.1} parent=1 // pred_fallthru
      _
    // Predicated region
    $region46: #{tpu_custom_call.1} parent=1 // pred_check
      _
    $region47: #{tpu_custom_call.1} parent=1 // pred_check_branch
      %147 = sbr.rel (0) target = $region49
    $region48: #{tpu_custom_call.1} parent=1 // pred_region
      %149 = dma.done [#allocation6], 16
    $region49: #{tpu_custom_call.1} parent=1 // pred_fallthru
      _
    // Predicated region
    $region50: #{tpu_custom_call.1} parent=1 // pred_check
      _
    $region51: #{tpu_custom_call.1} parent=1 // pred_check_branch
      %151 = sbr.rel (0) target = $region53
    $region52: #{tpu_custom_call.1} parent=1 // pred_region
      %153 = dma.done [#allocation4], 4096
    $region53: #{tpu_custom_call.1} parent=1 // pred_fallthru
      _
    // Predicated region
    $region54: #{tpu_custom_call.1} parent=1 // pred_check
      _
    $region55: #{tpu_custom_call.1} parent=1 // pred_check_branch
      %155 = sbr.rel (0) target = $region57
    $region56: #{tpu_custom_call.1} parent=1 // pred_region
      %157 = dma.done [#allocation9], 256
    $region57: #{tpu_custom_call.1} parent=1 // pred_fallthru
      _
    // Predicated region
    $region58: #{tpu_custom_call.1} parent=1 // pred_check
      _
    $region59: #{tpu_custom_call.1} parent=1 // pred_check_branch
      %159 = sbr.rel (0) target = $region61
    $region60: #{tpu_custom_call.1} parent=1 // pred_region
      %161 = dma.done [#allocation9], 256
    $region61: #{tpu_custom_call.1} parent=1 // pred_fallthru
      _
    // Predicated region
    $region62: #{tpu_custom_call.1} parent=1 // pred_check
      _
    $region63: #{tpu_custom_call.1} parent=1 // pred_check_branch
      %163 = sbr.rel (0) target = $region65
    $region64: #{tpu_custom_call.1} parent=1 // pred_region
      %165 = dma.done [#allocation12], 16384
    $region65: #{tpu_custom_call.1} parent=1 // pred_fallthru
      _
    // Predicated region
    $region66: #{tpu_custom_call.1} parent=1 // pred_check
      _
    $region67: #{tpu_custom_call.1} parent=1 // pred_check_branch
      %167 = sbr.rel (0) target = $region69
    $region68: #{tpu_custom_call.1} parent=1 // pred_region
      %169 = dma.done [#allocation12], 128
    $region69: #{tpu_custom_call.1} parent=1 // pred_fallthru
      _
    // Predicated region
    $region70: #{tpu_custom_call.1} parent=1 // pred_check
      _
    $region71: #{tpu_custom_call.1} parent=1 // pred_check_branch
      %171 = sbr.rel (0) target = $region73
    $region72: #{tpu_custom_call.1} parent=1 // pred_region
      %173 = dma.done [#allocation15], 2048
    $region73: #{tpu_custom_call.1} parent=1 // pred_fallthru
      _
    // Predicated region
    $region74: #{tpu_custom_call.1} parent=1 // pred_check
      _
    $region75: #{tpu_custom_call.1} parent=1 // pred_check_branch
      %175 = sbr.rel (0) target = $region77
    $region76: #{tpu_custom_call.1} parent=1 // pred_region
      %177 = dma.done [#allocation15], 2048
    $region77: #{tpu_custom_call.1} parent=1 // pred_fallthru
      _
    // Predicated region
    $region78: #{tpu_custom_call.1} parent=1 // pred_check
      _
    $region79: #{tpu_custom_call.1} parent=1 // pred_check_branch
      %179 = sbr.rel (0) target = $region81
    $region80: #{tpu_custom_call.1} parent=1 // pred_region
      %181 = dma.done [#allocation18], 2048
    $region81: #{tpu_custom_call.1} parent=1 // pred_fallthru
      _
    %182 = sfence
    %s183 = sld [smem:[#allocation3]]
    %s184 = scalar_lea.vmem [#allocation7], %s183
    %v185 = vld [vmem:[%s184] sm:$0x1]
    %186 = vst [vmem:[#allocation2] sm:$0x1] %v185
    %s187 = sld [smem:[#allocation3 + $0x1]]
    %s188 = scalar_lea.vmem [#allocation7], %s187
    %v189 = vld [vmem:[%s188] sm:$0x1]
    %190 = vst [vmem:[#allocation2 + $0x1] sm:$0x1] %v189
    %s191 = sld [smem:[#allocation3 + $0x2]]
    %s192 = scalar_lea.vmem [#allocation7], %s191
    %v193 = vld [vmem:[%s192] sm:$0x1]
    %194 = vst [vmem:[#allocation2 + $0x2] sm:$0x1] %v193
    %s195 = sld [smem:[#allocation3 + $0x3]]
    %s196 = scalar_lea.vmem [#allocation7], %s195
    %v197 = vld [vmem:[%s196] sm:$0x1]
    %198 = vst [vmem:[#allocation2 + $0x3] sm:$0x1] %v197
    %s199 = sld [smem:[#allocation3 + $0x4]]
    %s200 = scalar_lea.vmem [#allocation7], %s199
    %v201 = vld [vmem:[%s200] sm:$0x1]
    %202 = vst [vmem:[#allocation2 + $0x4] sm:$0x1] %v201
    %s203 = sld [smem:[#allocation3 + $0x5]]
    %s204 = scalar_lea.vmem [#allocation7], %s203
    %v205 = vld [vmem:[%s204] sm:$0x1]
    %206 = vst [vmem:[#allocation2 + $0x5] sm:$0x1] %v205
    %s207 = sld [smem:[#allocation3 + $0x6]]
    %s208 = scalar_lea.vmem [#allocation7], %s207
    %v209 = vld [vmem:[%s208] sm:$0x1]
    %210 = vst [vmem:[#allocation2 + $0x6] sm:$0x1] %v209
    %s211 = sld [smem:[#allocation3 + $0x7]]
    %s212 = scalar_lea.vmem [#allocation7], %s211
    %v213 = vld [vmem:[%s212] sm:$0x1]
    %214 = vst [vmem:[#allocation2 + $0x7] sm:$0x1] %v213
    %v215 = vld [vmem:[#allocation2] sm:$0xff]
    %v216 = vld [vmem:[#allocation8] sm:$0xff]
    %v217 = vld [vmem:[#allocation10] sm:$0xff]
    %v218 = vpack.c.bf16 %v215, %v215
    %v219 = vpack.c.bf16 %v216, %v216
    %v220 = vld [vmem:[#allocation11] sm:$0xff]
    %v221 = vld [vmem:[#allocation11 + $0x8] sm:$0xff]
    %v222 = vld [vmem:[#allocation11 + $0x10] sm:$0xff]
    %v223 = vld [vmem:[#allocation11 + $0x18] sm:$0xff]
    %v224 = vld [vmem:[#allocation11 + $0x20] sm:$0xff]
    %v225 = vld [vmem:[#allocation11 + $0x28] sm:$0xff]
    %v226 = vld [vmem:[#allocation11 + $0x30] sm:$0xff]
    %v227 = vld [vmem:[#allocation11 + $0x38] sm:$0xff]
    %v228 = vld [vmem:[#allocation11 + $0x40] sm:$0xff]
    %v229 = vld [vmem:[#allocation11 + $0x48] sm:$0xff]
    %v230 = vld [vmem:[#allocation11 + $0x50] sm:$0xff]
    %v231 = vld [vmem:[#allocation11 + $0x58] sm:$0xff]
    %v232 = vld [vmem:[#allocation11 + $0x60] sm:$0xff]
    %v233 = vld [vmem:[#allocation11 + $0x68] sm:$0xff]
    %v234 = vld [vmem:[#allocation11 + $0x70] sm:$0xff]
    %v235 = vld [vmem:[#allocation11 + $0x78] sm:$0xff]
    %v236 = vld [vmem:[#allocation11 + $0x80] sm:$0xff]
    %v237 = vld [vmem:[#allocation11 + $0x88] sm:$0xff]
    %v238 = vld [vmem:[#allocation11 + $0x90] sm:$0xff]
    %v239 = vld [vmem:[#allocation11 + $0x98] sm:$0xff]
    %v240 = vld [vmem:[#allocation11 + $0xa0] sm:$0xff]
    %v241 = vld [vmem:[#allocation11 + $0xa8] sm:$0xff]
    %v242 = vld [vmem:[#allocation11 + $0xb0] sm:$0xff]
    %v243 = vld [vmem:[#allocation11 + $0xb8] sm:$0xff]
    %v244 = vld [vmem:[#allocation11 + $0xc0] sm:$0xff]
    %v245 = vld [vmem:[#allocation11 + $0xc8] sm:$0xff]
    %v246 = vld [vmem:[#allocation11 + $0xd0] sm:$0xff]
    %v247 = vld [vmem:[#allocation11 + $0xd8] sm:$0xff]
    %v248 = vld [vmem:[#allocation11 + $0xe0] sm:$0xff]
    %v249 = vld [vmem:[#allocation11 + $0xe8] sm:$0xff]
    %v250 = vld [vmem:[#allocation11 + $0xf0] sm:$0xff]
    %v251 = vld [vmem:[#allocation11 + $0xf8] sm:$0xff]
    %v252 = vld [vmem:[#allocation11 + $0x100] sm:$0xff]
    %v253 = vld [vmem:[#allocation11 + $0x108] sm:$0xff]
    %v254 = vld [vmem:[#allocation11 + $0x110] sm:$0xff]
    %v255 = vld [vmem:[#allocation11 + $0x118] sm:$0xff]
    %v256 = vld [vmem:[#allocation11 + $0x120] sm:$0xff]
    %v257 = vld [vmem:[#allocation11 + $0x128] sm:$0xff]
    %v258 = vld [vmem:[#allocation11 + $0x130] sm:$0xff]
    %v259 = vld [vmem:[#allocation11 + $0x138] sm:$0xff]
    %v260 = vld [vmem:[#allocation11 + $0x140] sm:$0xff]
    %v261 = vld [vmem:[#allocation11 + $0x148] sm:$0xff]
    %v262 = vld [vmem:[#allocation11 + $0x150] sm:$0xff]
    %v263 = vld [vmem:[#allocation11 + $0x158] sm:$0xff]
    %v264 = vld [vmem:[#allocation11 + $0x160] sm:$0xff]
    %v265 = vld [vmem:[#allocation11 + $0x168] sm:$0xff]
    %v266 = vld [vmem:[#allocation11 + $0x170] sm:$0xff]
    %v267 = vld [vmem:[#allocation11 + $0x178] sm:$0xff]
    %v268 = vld [vmem:[#allocation11 + $0x180] sm:$0xff]
    %v269 = vld [vmem:[#allocation11 + $0x188] sm:$0xff]
    %v270 = vld [vmem:[#allocation11 + $0x190] sm:$0xff]
    %v271 = vld [vmem:[#allocation11 + $0x198] sm:$0xff]
    %v272 = vld [vmem:[#allocation11 + $0x1a0] sm:$0xff]
    %v273 = vld [vmem:[#allocation11 + $0x1a8] sm:$0xff]
    %v274 = vld [vmem:[#allocation11 + $0x1b0] sm:$0xff]
    %v275 = vld [vmem:[#allocation11 + $0x1b8] sm:$0xff]
    %v276 = vld [vmem:[#allocation11 + $0x1c0] sm:$0xff]
    %v277 = vld [vmem:[#allocation11 + $0x1c8] sm:$0xff]
    %v278 = vld [vmem:[#allocation11 + $0x1d0] sm:$0xff]
    %v279 = vld [vmem:[#allocation11 + $0x1d8] sm:$0xff]
    %v280 = vld [vmem:[#allocation11 + $0x1e0] sm:$0xff]
    %v281 = vld [vmem:[#allocation11 + $0x1e8] sm:$0xff]
    %v282 = vld [vmem:[#allocation11 + $0x1f0] sm:$0xff]
    %v283 = vld [vmem:[#allocation11 + $0x1f8] sm:$0xff]
    %v284 = vld [vmem:[#allocation13] sm:$0xf]
    %v286 = vperm.slane %v284, 0
    %v287 = vperm.slane %v284, 1
    %v288 = vperm.slane %v284, 2
    %v289 = vperm.slane %v284, 3
    %v358 = vunpack.c.l.b16 %v220
    %v359 = vunpack.c.h.b16 %v220
    %v360 = vunpack.c.l.b16 %v221
    %v361 = vunpack.c.h.b16 %v221
    %v362 = vunpack.c.l.b16 %v222
    %v363 = vunpack.c.h.b16 %v222
    %v364 = vunpack.c.l.b16 %v223
    %v365 = vunpack.c.h.b16 %v223
    %v366 = vunpack.c.l.b16 %v224
    %v367 = vunpack.c.h.b16 %v224
    %v368 = vunpack.c.l.b16 %v225
    %v369 = vunpack.c.h.b16 %v225
    %v370 = vunpack.c.l.b16 %v226
    %v371 = vunpack.c.h.b16 %v226
    %v372 = vunpack.c.l.b16 %v227
    %v373 = vunpack.c.h.b16 %v227
    %v374 = vunpack.c.l.b16 %v228
    %v375 = vunpack.c.h.b16 %v228
    %v376 = vunpack.c.l.b16 %v229
    %v377 = vunpack.c.h.b16 %v229
    %v378 = vunpack.c.l.b16 %v230
    %v379 = vunpack.c.h.b16 %v230
    %v380 = vunpack.c.l.b16 %v231
    %v381 = vunpack.c.h.b16 %v231
    %v382 = vunpack.c.l.b16 %v232
    %v383 = vunpack.c.h.b16 %v232
    %v384 = vunpack.c.l.b16 %v233
    %v385 = vunpack.c.h.b16 %v233
    %v386 = vunpack.c.l.b16 %v234
    %v387 = vunpack.c.h.b16 %v234
    %v388 = vunpack.c.l.b16 %v235
    %v389 = vunpack.c.h.b16 %v235
    %v390 = vunpack.c.l.b16 %v236
    %v391 = vunpack.c.h.b16 %v236
    %v392 = vunpack.c.l.b16 %v237
    %v393 = vunpack.c.h.b16 %v237
    %v394 = vunpack.c.l.b16 %v238
    %v395 = vunpack.c.h.b16 %v238
    %v396 = vunpack.c.l.b16 %v239
    %v397 = vunpack.c.h.b16 %v239
    %v398 = vunpack.c.l.b16 %v240
    %v399 = vunpack.c.h.b16 %v240
    %v400 = vunpack.c.l.b16 %v241
    %v401 = vunpack.c.h.b16 %v241
    %v402 = vunpack.c.l.b16 %v242
    %v403 = vunpack.c.h.b16 %v242
    %v404 = vunpack.c.l.b16 %v243
    %v405 = vunpack.c.h.b16 %v243
    %v406 = vunpack.c.l.b16 %v244
    %v407 = vunpack.c.h.b16 %v244
    %v408 = vunpack.c.l.b16 %v245
    %v409 = vunpack.c.h.b16 %v245
    %v410 = vunpack.c.l.b16 %v246
    %v411 = vunpack.c.h.b16 %v246
    %v412 = vunpack.c.l.b16 %v247
    %v413 = vunpack.c.h.b16 %v247
    %v414 = vunpack.c.l.b16 %v248
    %v415 = vunpack.c.h.b16 %v248
    %v416 = vunpack.c.l.b16 %v249
    %v417 = vunpack.c.h.b16 %v249
    %v418 = vunpack.c.l.b16 %v250
    %v419 = vunpack.c.h.b16 %v250
    %v420 = vunpack.c.l.b16 %v251
    %v421 = vunpack.c.h.b16 %v251
    %v422 = vunpack.c.l.b16 %v252
    %v423 = vunpack.c.h.b16 %v252
    %v424 = vunpack.c.l.b16 %v253
    %v425 = vunpack.c.h.b16 %v253
    %v426 = vunpack.c.l.b16 %v254
    %v427 = vunpack.c.h.b16 %v254
    %v428 = vunpack.c.l.b16 %v255
    %v429 = vunpack.c.h.b16 %v255
    %v430 = vunpack.c.l.b16 %v256
    %v431 = vunpack.c.h.b16 %v256
    %v432 = vunpack.c.l.b16 %v257
    %v433 = vunpack.c.h.b16 %v257
    %v434 = vunpack.c.l.b16 %v258
    %v435 = vunpack.c.h.b16 %v258
    %v436 = vunpack.c.l.b16 %v259
    %v437 = vunpack.c.h.b16 %v259
    %v438 = vunpack.c.l.b16 %v260
    %v439 = vunpack.c.h.b16 %v260
    %v440 = vunpack.c.l.b16 %v261
    %v441 = vunpack.c.h.b16 %v261
    %v442 = vunpack.c.l.b16 %v262
    %v443 = vunpack.c.h.b16 %v262
    %v444 = vunpack.c.l.b16 %v263
    %v445 = vunpack.c.h.b16 %v263
    %v446 = vunpack.c.l.b16 %v264
    %v447 = vunpack.c.h.b16 %v264
    %v448 = vunpack.c.l.b16 %v265
    %v449 = vunpack.c.h.b16 %v265
    %v450 = vunpack.c.l.b16 %v266
    %v451 = vunpack.c.h.b16 %v266
    %v452 = vunpack.c.l.b16 %v267
    %v453 = vunpack.c.h.b16 %v267
    %v454 = vunpack.c.l.b16 %v268
    %v455 = vunpack.c.h.b16 %v268
    %v456 = vunpack.c.l.b16 %v269
    %v457 = vunpack.c.h.b16 %v269
    %v458 = vunpack.c.l.b16 %v270
    %v459 = vunpack.c.h.b16 %v270
    %v460 = vunpack.c.l.b16 %v271
    %v461 = vunpack.c.h.b16 %v271
    %v462 = vunpack.c.l.b16 %v272
    %v463 = vunpack.c.h.b16 %v272
    %v464 = vunpack.c.l.b16 %v273
    %v465 = vunpack.c.h.b16 %v273
    %v466 = vunpack.c.l.b16 %v274
    %v467 = vunpack.c.h.b16 %v274
    %v468 = vunpack.c.l.b16 %v275
    %v469 = vunpack.c.h.b16 %v275
    %v470 = vunpack.c.l.b16 %v276
    %v471 = vunpack.c.h.b16 %v276
    %v472 = vunpack.c.l.b16 %v277
    %v473 = vunpack.c.h.b16 %v277
    %v474 = vunpack.c.l.b16 %v278
    %v475 = vunpack.c.h.b16 %v278
    %v476 = vunpack.c.l.b16 %v279
    %v477 = vunpack.c.h.b16 %v279
    %v478 = vunpack.c.l.b16 %v280
    %v479 = vunpack.c.h.b16 %v280
    %v480 = vunpack.c.l.b16 %v281
    %v481 = vunpack.c.h.b16 %v281
    %v482 = vunpack.c.l.b16 %v282
    %v483 = vunpack.c.h.b16 %v282
    %v484 = vunpack.c.l.b16 %v283
    %v485 = vunpack.c.h.b16 %v283
    %v486 = vpack.c.b16 %v362, %v358
    %v487 = vpack.c.b16 %v363, %v359
    %v488 = vpack.c.b16 %v364, %v360
    %v489 = vpack.c.b16 %v365, %v361
    %v490 = vpack.c.b16 %v370, %v366
    %v491 = vpack.c.b16 %v371, %v367
    %v492 = vpack.c.b16 %v372, %v368
    %v493 = vpack.c.b16 %v373, %v369
    %v494 = vpack.c.b16 %v378, %v374
    %v495 = vpack.c.b16 %v379, %v375
    %v496 = vpack.c.b16 %v380, %v376
    %v497 = vpack.c.b16 %v381, %v377
    %v498 = vpack.c.b16 %v386, %v382
    %v499 = vpack.c.b16 %v387, %v383
    %v500 = vpack.c.b16 %v388, %v384
    %v501 = vpack.c.b16 %v389, %v385
    %v502 = vpack.c.b16 %v394, %v390
    %v503 = vpack.c.b16 %v395, %v391
    %v504 = vpack.c.b16 %v396, %v392
    %v505 = vpack.c.b16 %v397, %v393
    %v506 = vpack.c.b16 %v402, %v398
    %v507 = vpack.c.b16 %v403, %v399
    %v508 = vpack.c.b16 %v404, %v400
    %v509 = vpack.c.b16 %v405, %v401
    %v510 = vpack.c.b16 %v410, %v406
    %v511 = vpack.c.b16 %v411, %v407
    %v512 = vpack.c.b16 %v412, %v408
    %v513 = vpack.c.b16 %v413, %v409
    %v514 = vpack.c.b16 %v418, %v414
    %v515 = vpack.c.b16 %v419, %v415
    %v516 = vpack.c.b16 %v420, %v416
    %v517 = vpack.c.b16 %v421, %v417
    %v518 = vpack.c.b16 %v426, %v422
    %v519 = vpack.c.b16 %v427, %v423
    %v520 = vpack.c.b16 %v428, %v424
    %v521 = vpack.c.b16 %v429, %v425
    %v522 = vpack.c.b16 %v434, %v430
    %v523 = vpack.c.b16 %v435, %v431
    %v524 = vpack.c.b16 %v436, %v432
    %v525 = vpack.c.b16 %v437, %v433
    %v526 = vpack.c.b16 %v442, %v438
    %v527 = vpack.c.b16 %v443, %v439
    %v528 = vpack.c.b16 %v444, %v440
    %v529 = vpack.c.b16 %v445, %v441
    %v530 = vpack.c.b16 %v450, %v446
    %v531 = vpack.c.b16 %v451, %v447
    %v532 = vpack.c.b16 %v452, %v448
    %v533 = vpack.c.b16 %v453, %v449
    %v534 = vpack.c.b16 %v458, %v454
    %v535 = vpack.c.b16 %v459, %v455
    %v536 = vpack.c.b16 %v460, %v456
    %v537 = vpack.c.b16 %v461, %v457
    %v538 = vpack.c.b16 %v466, %v462
    %v539 = vpack.c.b16 %v467, %v463
    %v540 = vpack.c.b16 %v468, %v464
    %v541 = vpack.c.b16 %v469, %v465
    %v542 = vpack.c.b16 %v474, %v470
    %v543 = vpack.c.b16 %v475, %v471
    %v544 = vpack.c.b16 %v476, %v472
    %v545 = vpack.c.b16 %v477, %v473
    %v546 = vpack.c.b16 %v482, %v478
    %v547 = vpack.c.b16 %v483, %v479
    %v548 = vpack.c.b16 %v484, %v480
    %v549 = vpack.c.b16 %v485, %v481
    %614 = vmatpush.bf16.msra.mxu0 %v514
    %615 = vmatpush.bf16.msra.mxu0 %v510
    %616 = vmatpush.bf16.msra.mxu0 %v506
    %617 = vmatpush.bf16.msra.mxu0 %v502
    %618 = vmatpush.bf16.msra.mxu0 %v498
    %619 = vmatpush.bf16.msra.mxu0 %v494
    %620 = vmatpush.bf16.msra.mxu0 %v490
    %621 = vmatpush.bf16.msra.mxu0 %v486
    %622 = vmatmul.bf16.gmra.mxu0 %v218
    %v623 = vpop.f32.mrf.mxu0
    %v624 = vadd.f32 %v286, %v623
    %v625 = vpop.f32.mrf.mxu0
    %626 = vdwg.mxu0
    %627 = vmatpush.bf16.msra.mxu0 %v546
    %628 = vmatpush.bf16.msra.mxu0 %v542
    %629 = vmatpush.bf16.msra.mxu0 %v538
    %630 = vmatpush.bf16.msra.mxu0 %v534
    %631 = vmatpush.bf16.msra.mxu0 %v530
    %632 = vmatpush.bf16.msra.mxu0 %v526
    %633 = vmatpush.bf16.msra.mxu0 %v522
    %634 = vmatpush.bf16.msra.mxu0 %v518
    %635 = vmatmul.bf16.gmra.mxu0 %v219
    %v636 = vpop.f32.mrf.mxu0
    %v637 = vadd.f32 %v624, %v636
    %v638 = vpop.f32.mrf.mxu0
    %639 = vdwg.mxu0
    %640 = vmatpush.bf16.msra.mxu0 %v515
    %641 = vmatpush.bf16.msra.mxu0 %v511
    %642 = vmatpush.bf16.msra.mxu0 %v507
    %643 = vmatpush.bf16.msra.mxu0 %v503
    %644 = vmatpush.bf16.msra.mxu0 %v499
    %645 = vmatpush.bf16.msra.mxu0 %v495
    %646 = vmatpush.bf16.msra.mxu0 %v491
    %647 = vmatpush.bf16.msra.mxu0 %v487
    %648 = vmatmul.bf16.gmra.mxu0 %v218
    %v649 = vpop.f32.mrf.mxu0
    %v650 = vadd.f32 %v287, %v649
    %v651 = vpop.f32.mrf.mxu0
    %652 = vdwg.mxu0
    %653 = vmatpush.bf16.msra.mxu0 %v547
    %654 = vmatpush.bf16.msra.mxu0 %v543
    %655 = vmatpush.bf16.msra.mxu0 %v539
    %656 = vmatpush.bf16.msra.mxu0 %v535
    %657 = vmatpush.bf16.msra.mxu0 %v531
    %658 = vmatpush.bf16.msra.mxu0 %v527
    %659 = vmatpush.bf16.msra.mxu0 %v523
    %660 = vmatpush.bf16.msra.mxu0 %v519
    %661 = vmatmul.bf16.gmra.mxu0 %v219
    %v662 = vpop.f32.mrf.mxu0
    %v663 = vadd.f32 %v650, %v662
    %v664 = vpop.f32.mrf.mxu0
    %665 = vdwg.mxu0
    %666 = vmatpush.bf16.msra.mxu0 %v516
    %667 = vmatpush.bf16.msra.mxu0 %v512
    %668 = vmatpush.bf16.msra.mxu0 %v508
    %669 = vmatpush.bf16.msra.mxu0 %v504
    %670 = vmatpush.bf16.msra.mxu0 %v500
    %671 = vmatpush.bf16.msra.mxu0 %v496
    %672 = vmatpush.bf16.msra.mxu0 %v492
    %673 = vmatpush.bf16.msra.mxu0 %v488
    %674 = vmatmul.bf16.gmra.mxu0 %v218
    %v675 = vpop.f32.mrf.mxu0
    %v676 = vadd.f32 %v288, %v675
    %v677 = vpop.f32.mrf.mxu0
    %678 = vdwg.mxu0
    %679 = vmatpush.bf16.msra.mxu0 %v548
    %680 = vmatpush.bf16.msra.mxu0 %v544
    %681 = vmatpush.bf16.msra.mxu0 %v540
    %682 = vmatpush.bf16.msra.mxu0 %v536
    %683 = vmatpush.bf16.msra.mxu0 %v532
    %684 = vmatpush.bf16.msra.mxu0 %v528
    %685 = vmatpush.bf16.msra.mxu0 %v524
    %686 = vmatpush.bf16.msra.mxu0 %v520
    %687 = vmatmul.bf16.gmra.mxu0 %v219
    %v688 = vpop.f32.mrf.mxu0
    %v689 = vadd.f32 %v676, %v688
    %v690 = vpop.f32.mrf.mxu0
    %691 = vdwg.mxu0
    %692 = vmatpush.bf16.msra.mxu0 %v517
    %693 = vmatpush.bf16.msra.mxu0 %v513
    %694 = vmatpush.bf16.msra.mxu0 %v509
    %695 = vmatpush.bf16.msra.mxu0 %v505
    %696 = vmatpush.bf16.msra.mxu0 %v501
    %697 = vmatpush.bf16.msra.mxu0 %v497
    %698 = vmatpush.bf16.msra.mxu0 %v493
    %699 = vmatpush.bf16.msra.mxu0 %v489
    %700 = vmatmul.bf16.gmra.mxu0 %v218
    %v701 = vpop.f32.mrf.mxu0
    %v702 = vadd.f32 %v289, %v701
    %v703 = vpop.f32.mrf.mxu0
    %704 = vdwg.mxu0
    %705 = vmatpush.bf16.msra.mxu0 %v549
    %706 = vmatpush.bf16.msra.mxu0 %v545
    %707 = vmatpush.bf16.msra.mxu0 %v541
    %708 = vmatpush.bf16.msra.mxu0 %v537
    %709 = vmatpush.bf16.msra.mxu0 %v533
    %710 = vmatpush.bf16.msra.mxu0 %v529
    %711 = vmatpush.bf16.msra.mxu0 %v525
    %712 = vmatpush.bf16.msra.mxu0 %v521
    %713 = vmatmul.bf16.gmra.mxu0 %v219
    %v714 = vpop.f32.mrf.mxu0
    %v715 = vadd.f32 %v702, %v714
    %v716 = vpop.f32.mrf.mxu0
    %717 = vdwg.mxu0
    %v718 = vxor.u32 %v637, 2147483648
    %v719 = vmul.f32 %v718, 1.442695
    %v720 = vpow.pop %v719
    %v721 = vadd.f32 %v720, 1.0
    %v722 = vrcp.pop %v721
    %v723 = vmul.f32 %v721, %v722
    %v724 = vsub.f32 1.0, %v723
    %v725 = vmul.f32 %v722, %v724
    %v726 = vadd.f32 %v722, %v725
    %vm727 = vweird.f32 %v721
    %vm728 = vweird.f32 %v722
    %vm729 = vmor %vm727, %vm728
    %v730 = vsel %vm729, %v722, %v726
    %v731 = vand.u32 2147483647, %v721
    %vm732 = vcmp.eq.f32.partialorder %v731, 8.507059e+37
    %v733 = vand.u32 %v721, 2147483648
    %v734 = vor.u32 1.1754944e-38, %v733
    %v735 = vsel %vm732, %v734, %v730
    %v736 = vmul.f32 1.0, %v735
    %v737 = vxor.u32 %v663, 2147483648
    %v738 = vmul.f32 %v737, 1.442695
    %v739 = vpow.pop %v738
    %v740 = vadd.f32 %v739, 1.0
    %v741 = vrcp.pop %v740
    %v742 = vmul.f32 %v740, %v741
    %v743 = vsub.f32 1.0, %v742
    %v744 = vmul.f32 %v741, %v743
    %v745 = vadd.f32 %v741, %v744
    %vm746 = vweird.f32 %v740
    %vm747 = vweird.f32 %v741
    %vm748 = vmor %vm746, %vm747
    %v749 = vsel %vm748, %v741, %v745
    %v750 = vand.u32 2147483647, %v740
    %vm751 = vcmp.eq.f32.partialorder %v750, 8.507059e+37
    %v752 = vand.u32 %v740, 2147483648
    %v753 = vor.u32 1.1754944e-38, %v752
    %v754 = vsel %vm751, %v753, %v749
    %v755 = vmul.f32 1.0, %v754
    %v756 = vtanh.pop %v689
    %v757 = vxor.u32 %v715, 2147483648
    %v758 = vmul.f32 %v757, 1.442695
    %v759 = vpow.pop %v758
    %v760 = vadd.f32 %v759, 1.0
    %v761 = vrcp.pop %v760
    %v762 = vmul.f32 %v760, %v761
    %v763 = vsub.f32 1.0, %v762
    %v764 = vmul.f32 %v761, %v763
    %v765 = vadd.f32 %v761, %v764
    %vm766 = vweird.f32 %v760
    %vm767 = vweird.f32 %v761
    %vm768 = vmor %vm766, %vm767
    %v769 = vsel %vm768, %v761, %v765
    %v770 = vand.u32 2147483647, %v760
    %vm771 = vcmp.eq.f32.partialorder %v770, 8.507059e+37
    %v772 = vand.u32 %v760, 2147483648
    %v773 = vor.u32 1.1754944e-38, %v772
    %v774 = vsel %vm771, %v773, %v769
    %v775 = vmul.f32 1.0, %v774
    %v776 = vmul.f32 %v755, %v217
    %v777 = vmul.f32 %v736, %v756
    %v778 = vadd.f32 %v776, %v777
    %v779 = vtanh.pop %v778
    %v780 = vmul.f32 %v775, %v779
    %781 = vst [vmem:[#allocation20] sm:$0xff] %v780
    %782 = vst [vmem:[#allocation22] sm:$0xff] %v778
    %s783 = scalar_lea.vmem [#allocation8], 8
    %v784 = vld [vmem:[%s783] sm:$0xff]
    %s785 = scalar_lea.vmem [#allocation10], 8
    %v786 = vld [vmem:[%s785] sm:$0xff]
    %v787 = vpack.c.bf16 %v780, %v780
    %v788 = vpack.c.bf16 %v784, %v784
    %s789 = scalar_lea.vmem [#allocation11], 512
    %v790 = vld [vmem:[%s789] sm:$0xff]
    %v791 = vld [vmem:[%s789 + $0x8] sm:$0xff]
    %v792 = vld [vmem:[%s789 + $0x10] sm:$0xff]
    %v793 = vld [vmem:[%s789 + $0x18] sm:$0xff]
    %v794 = vld [vmem:[%s789 + $0x20] sm:$0xff]
    %v795 = vld [vmem:[%s789 + $0x28] sm:$0xff]
    %v796 = vld [vmem:[%s789 + $0x30] sm:$0xff]
    %v797 = vld [vmem:[%s789 + $0x38] sm:$0xff]
    %v798 = vld [vmem:[%s789 + $0x40] sm:$0xff]
    %v799 = vld [vmem:[%s789 + $0x48] sm:$0xff]
    %v800 = vld [vmem:[%s789 + $0x50] sm:$0xff]
    %v801 = vld [vmem:[%s789 + $0x58] sm:$0xff]
    %v802 = vld [vmem:[%s789 + $0x60] sm:$0xff]
    %v803 = vld [vmem:[%s789 + $0x68] sm:$0xff]
    %v804 = vld [vmem:[%s789 + $0x70] sm:$0xff]
    %v805 = vld [vmem:[%s789 + $0x78] sm:$0xff]
    %v806 = vld [vmem:[%s789 + $0x80] sm:$0xff]
    %v807 = vld [vmem:[%s789 + $0x88] sm:$0xff]
    %v808 = vld [vmem:[%s789 + $0x90] sm:$0xff]
    %v809 = vld [vmem:[%s789 + $0x98] sm:$0xff]
    %v810 = vld [vmem:[%s789 + $0xa0] sm:$0xff]
    %v811 = vld [vmem:[%s789 + $0xa8] sm:$0xff]
    %v812 = vld [vmem:[%s789 + $0xb0] sm:$0xff]
    %v813 = vld [vmem:[%s789 + $0xb8] sm:$0xff]
    %v814 = vld [vmem:[%s789 + $0xc0] sm:$0xff]
    %v815 = vld [vmem:[%s789 + $0xc8] sm:$0xff]
    %v816 = vld [vmem:[%s789 + $0xd0] sm:$0xff]
    %v817 = vld [vmem:[%s789 + $0xd8] sm:$0xff]
    %v818 = vld [vmem:[%s789 + $0xe0] sm:$0xff]
    %v819 = vld [vmem:[%s789 + $0xe8] sm:$0xff]
    %v820 = vld [vmem:[%s789 + $0xf0] sm:$0xff]
    %v821 = vld [vmem:[%s789 + $0xf8] sm:$0xff]
    %v822 = vld [vmem:[%s789 + $0x100] sm:$0xff]
    %v823 = vld [vmem:[%s789 + $0x108] sm:$0xff]
    %v824 = vld [vmem:[%s789 + $0x110] sm:$0xff]
    %v825 = vld [vmem:[%s789 + $0x118] sm:$0xff]
    %v826 = vld [vmem:[%s789 + $0x120] sm:$0xff]
    %v827 = vld [vmem:[%s789 + $0x128] sm:$0xff]
    %v828 = vld [vmem:[%s789 + $0x130] sm:$0xff]
    %v829 = vld [vmem:[%s789 + $0x138] sm:$0xff]
    %v830 = vld [vmem:[%s789 + $0x140] sm:$0xff]
    %v831 = vld [vmem:[%s789 + $0x148] sm:$0xff]
    %v832 = vld [vmem:[%s789 + $0x150] sm:$0xff]
    %v833 = vld [vmem:[%s789 + $0x158] sm:$0xff]
    %v834 = vld [vmem:[%s789 + $0x160] sm:$0xff]
    %v835 = vld [vmem:[%s789 + $0x168] sm:$0xff]
    %v836 = vld [vmem:[%s789 + $0x170] sm:$0xff]
    %v837 = vld [vmem:[%s789 + $0x178] sm:$0xff]
    %v838 = vld [vmem:[%s789 + $0x180] sm:$0xff]
    %v839 = vld [vmem:[%s789 + $0x188] sm:$0xff]
    %v840 = vld [vmem:[%s789 + $0x190] sm:$0xff]
    %v841 = vld [vmem:[%s789 + $0x198] sm:$0xff]
    %v842 = vld [vmem:[%s789 + $0x1a0] sm:$0xff]
    %v843 = vld [vmem:[%s789 + $0x1a8] sm:$0xff]
    %v844 = vld [vmem:[%s789 + $0x1b0] sm:$0xff]
    %v845 = vld [vmem:[%s789 + $0x1b8] sm:$0xff]
    %v846 = vld [vmem:[%s789 + $0x1c0] sm:$0xff]
    %v847 = vld [vmem:[%s789 + $0x1c8] sm:$0xff]
    %v848 = vld [vmem:[%s789 + $0x1d0] sm:$0xff]
    %v849 = vld [vmem:[%s789 + $0x1d8] sm:$0xff]
    %v850 = vld [vmem:[%s789 + $0x1e0] sm:$0xff]
    %v851 = vld [vmem:[%s789 + $0x1e8] sm:$0xff]
    %v852 = vld [vmem:[%s789 + $0x1f0] sm:$0xff]
    %v853 = vld [vmem:[%s789 + $0x1f8] sm:$0xff]
    %s854 = scalar_lea.vmem [#allocation13], 4
    %v855 = vld [vmem:[%s854] sm:$0xf]
    %v857 = vperm.slane %v855, 0
    %v858 = vperm.slane %v855, 1
    %v859 = vperm.slane %v855, 2
    %v860 = vperm.slane %v855, 3
    %v929 = vunpack.c.l.b16 %v790
    %v930 = vunpack.c.h.b16 %v790
    %v931 = vunpack.c.l.b16 %v791
    %v932 = vunpack.c.h.b16 %v791
    %v933 = vunpack.c.l.b16 %v792
    %v934 = vunpack.c.h.b16 %v792
    %v935 = vunpack.c.l.b16 %v793
    %v936 = vunpack.c.h.b16 %v793
    %v937 = vunpack.c.l.b16 %v794
    %v938 = vunpack.c.h.b16 %v794
    %v939 = vunpack.c.l.b16 %v795
    %v940 = vunpack.c.h.b16 %v795
    %v941 = vunpack.c.l.b16 %v796
    %v942 = vunpack.c.h.b16 %v796
    %v943 = vunpack.c.l.b16 %v797
    %v944 = vunpack.c.h.b16 %v797
    %v945 = vunpack.c.l.b16 %v798
    %v946 = vunpack.c.h.b16 %v798
    %v947 = vunpack.c.l.b16 %v799
    %v948 = vunpack.c.h.b16 %v799
    %v949 = vunpack.c.l.b16 %v800
    %v950 = vunpack.c.h.b16 %v800
    %v951 = vunpack.c.l.b16 %v801
    %v952 = vunpack.c.h.b16 %v801
    %v953 = vunpack.c.l.b16 %v802
    %v954 = vunpack.c.h.b16 %v802
    %v955 = vunpack.c.l.b16 %v803
    %v956 = vunpack.c.h.b16 %v803
    %v957 = vunpack.c.l.b16 %v804
    %v958 = vunpack.c.h.b16 %v804
    %v959 = vunpack.c.l.b16 %v805
    %v960 = vunpack.c.h.b16 %v805
    %v961 = vunpack.c.l.b16 %v806
    %v962 = vunpack.c.h.b16 %v806
    %v963 = vunpack.c.l.b16 %v807
    %v964 = vunpack.c.h.b16 %v807
    %v965 = vunpack.c.l.b16 %v808
    %v966 = vunpack.c.h.b16 %v808
    %v967 = vunpack.c.l.b16 %v809
    %v968 = vunpack.c.h.b16 %v809
    %v969 = vunpack.c.l.b16 %v810
    %v970 = vunpack.c.h.b16 %v810
    %v971 = vunpack.c.l.b16 %v811
    %v972 = vunpack.c.h.b16 %v811
    %v973 = vunpack.c.l.b16 %v812
    %v974 = vunpack.c.h.b16 %v812
    %v975 = vunpack.c.l.b16 %v813
    %v976 = vunpack.c.h.b16 %v813
    %v977 = vunpack.c.l.b16 %v814
    %v978 = vunpack.c.h.b16 %v814
    %v979 = vunpack.c.l.b16 %v815
    %v980 = vunpack.c.h.b16 %v815
    %v981 = vunpack.c.l.b16 %v816
    %v982 = vunpack.c.h.b16 %v816
    %v983 = vunpack.c.l.b16 %v817
    %v984 = vunpack.c.h.b16 %v817
    %v985 = vunpack.c.l.b16 %v818
    %v986 = vunpack.c.h.b16 %v818
    %v987 = vunpack.c.l.b16 %v819
    %v988 = vunpack.c.h.b16 %v819
    %v989 = vunpack.c.l.b16 %v820
    %v990 = vunpack.c.h.b16 %v820
    %v991 = vunpack.c.l.b16 %v821
    %v992 = vunpack.c.h.b16 %v821
    %v993 = vunpack.c.l.b16 %v822
    %v994 = vunpack.c.h.b16 %v822
    %v995 = vunpack.c.l.b16 %v823
    %v996 = vunpack.c.h.b16 %v823
    %v997 = vunpack.c.l.b16 %v824
    %v998 = vunpack.c.h.b16 %v824
    %v999 = vunpack.c.l.b16 %v825
    %v1000 = vunpack.c.h.b16 %v825
    %v1001 = vunpack.c.l.b16 %v826
    %v1002 = vunpack.c.h.b16 %v826
    %v1003 = vunpack.c.l.b16 %v827
    %v1004 = vunpack.c.h.b16 %v827
    %v1005 = vunpack.c.l.b16 %v828
    %v1006 = vunpack.c.h.b16 %v828
    %v1007 = vunpack.c.l.b16 %v829
    %v1008 = vunpack.c.h.b16 %v829
    %v1009 = vunpack.c.l.b16 %v830
    %v1010 = vunpack.c.h.b16 %v830
    %v1011 = vunpack.c.l.b16 %v831
    %v1012 = vunpack.c.h.b16 %v831
    %v1013 = vunpack.c.l.b16 %v832
    %v1014 = vunpack.c.h.b16 %v832
    %v1015 = vunpack.c.l.b16 %v833
    %v1016 = vunpack.c.h.b16 %v833
    %v1017 = vunpack.c.l.b16 %v834
    %v1018 = vunpack.c.h.b16 %v834
    %v1019 = vunpack.c.l.b16 %v835
    %v1020 = vunpack.c.h.b16 %v835
    %v1021 = vunpack.c.l.b16 %v836
    %v1022 = vunpack.c.h.b16 %v836
    %v1023 = vunpack.c.l.b16 %v837
    %v1024 = vunpack.c.h.b16 %v837
    %v1025 = vunpack.c.l.b16 %v838
    %v1026 = vunpack.c.h.b16 %v838
    %v1027 = vunpack.c.l.b16 %v839
    %v1028 = vunpack.c.h.b16 %v839
    %v1029 = vunpack.c.l.b16 %v840
    %v1030 = vunpack.c.h.b16 %v840
    %v1031 = vunpack.c.l.b16 %v841
    %v1032 = vunpack.c.h.b16 %v841
    %v1033 = vunpack.c.l.b16 %v842
    %v1034 = vunpack.c.h.b16 %v842
    %v1035 = vunpack.c.l.b16 %v843
    %v1036 = vunpack.c.h.b16 %v843
    %v1037 = vunpack.c.l.b16 %v844
    %v1038 = vunpack.c.h.b16 %v844
    %v1039 = vunpack.c.l.b16 %v845
    %v1040 = vunpack.c.h.b16 %v845
    %v1041 = vunpack.c.l.b16 %v846
    %v1042 = vunpack.c.h.b16 %v846
    %v1043 = vunpack.c.l.b16 %v847
    %v1044 = vunpack.c.h.b16 %v847
    %v1045 = vunpack.c.l.b16 %v848
    %v1046 = vunpack.c.h.b16 %v848
    %v1047 = vunpack.c.l.b16 %v849
    %v1048 = vunpack.c.h.b16 %v849
    %v1049 = vunpack.c.l.b16 %v850
    %v1050 = vunpack.c.h.b16 %v850
    %v1051 = vunpack.c.l.b16 %v851
    %v1052 = vunpack.c.h.b16 %v851
    %v1053 = vunpack.c.l.b16 %v852
    %v1054 = vunpack.c.h.b16 %v852
    %v1055 = vunpack.c.l.b16 %v853
    %v1056 = vunpack.c.h.b16 %v853
    %v1057 = vpack.c.b16 %v933, %v929
    %v1058 = vpack.c.b16 %v934, %v930
    %v1059 = vpack.c.b16 %v935, %v931
    %v1060 = vpack.c.b16 %v936, %v932
    %v1061 = vpack.c.b16 %v941, %v937
    %v1062 = vpack.c.b16 %v942, %v938
    %v1063 = vpack.c.b16 %v943, %v939
    %v1064 = vpack.c.b16 %v944, %v940
    %v1065 = vpack.c.b16 %v949, %v945
    %v1066 = vpack.c.b16 %v950, %v946
    %v1067 = vpack.c.b16 %v951, %v947
    %v1068 = vpack.c.b16 %v952, %v948
    %v1069 = vpack.c.b16 %v957, %v953
    %v1070 = vpack.c.b16 %v958, %v954
    %v1071 = vpack.c.b16 %v959, %v955
    %v1072 = vpack.c.b16 %v960, %v956
    %v1073 = vpack.c.b16 %v965, %v961
    %v1074 = vpack.c.b16 %v966, %v962
    %v1075 = vpack.c.b16 %v967, %v963
    %v1076 = vpack.c.b16 %v968, %v964
    %v1077 = vpack.c.b16 %v973, %v969
    %v1078 = vpack.c.b16 %v974, %v970
    %v1079 = vpack.c.b16 %v975, %v971
    %v1080 = vpack.c.b16 %v976, %v972
    %v1081 = vpack.c.b16 %v981, %v977
    %v1082 = vpack.c.b16 %v982, %v978
    %v1083 = vpack.c.b16 %v983, %v979
    %v1084 = vpack.c.b16 %v984, %v980
    %v1085 = vpack.c.b16 %v989, %v985
    %v1086 = vpack.c.b16 %v990, %v986
    %v1087 = vpack.c.b16 %v991, %v987
    %v1088 = vpack.c.b16 %v992, %v988
    %v1089 = vpack.c.b16 %v997, %v993
    %v1090 = vpack.c.b16 %v998, %v994
    %v1091 = vpack.c.b16 %v999, %v995
    %v1092 = vpack.c.b16 %v1000, %v996
    %v1093 = vpack.c.b16 %v1005, %v1001
    %v1094 = vpack.c.b16 %v1006, %v1002
    %v1095 = vpack.c.b16 %v1007, %v1003
    %v1096 = vpack.c.b16 %v1008, %v1004
    %v1097 = vpack.c.b16 %v1013, %v1009
    %v1098 = vpack.c.b16 %v1014, %v1010
    %v1099 = vpack.c.b16 %v1015, %v1011
    %v1100 = vpack.c.b16 %v1016, %v1012
    %v1101 = vpack.c.b16 %v1021, %v1017
    %v1102 = vpack.c.b16 %v1022, %v1018
    %v1103 = vpack.c.b16 %v1023, %v1019
    %v1104 = vpack.c.b16 %v1024, %v1020
    %v1105 = vpack.c.b16 %v1029, %v1025
    %v1106 = vpack.c.b16 %v1030, %v1026
    %v1107 = vpack.c.b16 %v1031, %v1027
    %v1108 = vpack.c.b16 %v1032, %v1028
    %v1109 = vpack.c.b16 %v1037, %v1033
    %v1110 = vpack.c.b16 %v1038, %v1034
    %v1111 = vpack.c.b16 %v1039, %v1035
    %v1112 = vpack.c.b16 %v1040, %v1036
    %v1113 = vpack.c.b16 %v1045, %v1041
    %v1114 = vpack.c.b16 %v1046, %v1042
    %v1115 = vpack.c.b16 %v1047, %v1043
    %v1116 = vpack.c.b16 %v1048, %v1044
    %v1117 = vpack.c.b16 %v1053, %v1049
    %v1118 = vpack.c.b16 %v1054, %v1050
    %v1119 = vpack.c.b16 %v1055, %v1051
    %v1120 = vpack.c.b16 %v1056, %v1052
    %1185 = vmatpush.bf16.msra.mxu0 %v1085
    %1186 = vmatpush.bf16.msra.mxu0 %v1081
    %1187 = vmatpush.bf16.msra.mxu0 %v1077
    %1188 = vmatpush.bf16.msra.mxu0 %v1073
    %1189 = vmatpush.bf16.msra.mxu0 %v1069
    %1190 = vmatpush.bf16.msra.mxu0 %v1065
    %1191 = vmatpush.bf16.msra.mxu0 %v1061
    %1192 = vmatpush.bf16.msra.mxu0 %v1057
    %1193 = vmatmul.bf16.gmra.mxu0 %v787
    %v1194 = vpop.f32.mrf.mxu0
    %v1195 = vadd.f32 %v857, %v1194
    %v1196 = vpop.f32.mrf.mxu0
    %1197 = vdwg.mxu0
    %1198 = vmatpush.bf16.msra.mxu0 %v1117
    %1199 = vmatpush.bf16.msra.mxu0 %v1113
    %1200 = vmatpush.bf16.msra.mxu0 %v1109
    %1201 = vmatpush.bf16.msra.mxu0 %v1105
    %1202 = vmatpush.bf16.msra.mxu0 %v1101
    %1203 = vmatpush.bf16.msra.mxu0 %v1097
    %1204 = vmatpush.bf16.msra.mxu0 %v1093
    %1205 = vmatpush.bf16.msra.mxu0 %v1089
    %1206 = vmatmul.bf16.gmra.mxu0 %v788
    %v1207 = vpop.f32.mrf.mxu0
    %v1208 = vadd.f32 %v1195, %v1207
    %v1209 = vpop.f32.mrf.mxu0
    %1210 = vdwg.mxu0
    %1211 = vmatpush.bf16.msra.mxu0 %v1086
    %1212 = vmatpush.bf16.msra.mxu0 %v1082
    %1213 = vmatpush.bf16.msra.mxu0 %v1078
    %1214 = vmatpush.bf16.msra.mxu0 %v1074
    %1215 = vmatpush.bf16.msra.mxu0 %v1070
    %1216 = vmatpush.bf16.msra.mxu0 %v1066
    %1217 = vmatpush.bf16.msra.mxu0 %v1062
    %1218 = vmatpush.bf16.msra.mxu0 %v1058
    %1219 = vmatmul.bf16.gmra.mxu0 %v787
    %v1220 = vpop.f32.mrf.mxu0
    %v1221 = vadd.f32 %v858, %v1220
    %v1222 = vpop.f32.mrf.mxu0
    %1223 = vdwg.mxu0
    %1224 = vmatpush.bf16.msra.mxu0 %v1118
    %1225 = vmatpush.bf16.msra.mxu0 %v1114
    %1226 = vmatpush.bf16.msra.mxu0 %v1110
    %1227 = vmatpush.bf16.msra.mxu0 %v1106
    %1228 = vmatpush.bf16.msra.mxu0 %v1102
    %1229 = vmatpush.bf16.msra.mxu0 %v1098
    %1230 = vmatpush.bf16.msra.mxu0 %v1094
    %1231 = vmatpush.bf16.msra.mxu0 %v1090
    %1232 = vmatmul.bf16.gmra.mxu0 %v788
    %v1233 = vpop.f32.mrf.mxu0
    %v1234 = vadd.f32 %v1221, %v1233
    %v1235 = vpop.f32.mrf.mxu0
    %1236 = vdwg.mxu0
    %1237 = vmatpush.bf16.msra.mxu0 %v1087
    %1238 = vmatpush.bf16.msra.mxu0 %v1083
    %1239 = vmatpush.bf16.msra.mxu0 %v1079
    %1240 = vmatpush.bf16.msra.mxu0 %v1075
    %1241 = vmatpush.bf16.msra.mxu0 %v1071
    %1242 = vmatpush.bf16.msra.mxu0 %v1067
    %1243 = vmatpush.bf16.msra.mxu0 %v1063
    %1244 = vmatpush.bf16.msra.mxu0 %v1059
    %1245 = vmatmul.bf16.gmra.mxu0 %v787
    %v1246 = vpop.f32.mrf.mxu0
    %v1247 = vadd.f32 %v859, %v1246
    %v1248 = vpop.f32.mrf.mxu0
    %1249 = vdwg.mxu0
    %1250 = vmatpush.bf16.msra.mxu0 %v1119
    %1251 = vmatpush.bf16.msra.mxu0 %v1115
    %1252 = vmatpush.bf16.msra.mxu0 %v1111
    %1253 = vmatpush.bf16.msra.mxu0 %v1107
    %1254 = vmatpush.bf16.msra.mxu0 %v1103
    %1255 = vmatpush.bf16.msra.mxu0 %v1099
    %1256 = vmatpush.bf16.msra.mxu0 %v1095
    %1257 = vmatpush.bf16.msra.mxu0 %v1091
    %1258 = vmatmul.bf16.gmra.mxu0 %v788
    %v1259 = vpop.f32.mrf.mxu0
    %v1260 = vadd.f32 %v1247, %v1259
    %v1261 = vpop.f32.mrf.mxu0
    %1262 = vdwg.mxu0
    %1263 = vmatpush.bf16.msra.mxu0 %v1088
    %1264 = vmatpush.bf16.msra.mxu0 %v1084
    %1265 = vmatpush.bf16.msra.mxu0 %v1080
    %1266 = vmatpush.bf16.msra.mxu0 %v1076
    %1267 = vmatpush.bf16.msra.mxu0 %v1072
    %1268 = vmatpush.bf16.msra.mxu0 %v1068
    %1269 = vmatpush.bf16.msra.mxu0 %v1064
    %1270 = vmatpush.bf16.msra.mxu0 %v1060
    %1271 = vmatmul.bf16.gmra.mxu0 %v787
    %v1272 = vpop.f32.mrf.mxu0
    %v1273 = vadd.f32 %v860, %v1272
    %v1274 = vpop.f32.mrf.mxu0
    %1275 = vdwg.mxu0
    %1276 = vmatpush.bf16.msra.mxu0 %v1120
    %1277 = vmatpush.bf16.msra.mxu0 %v1116
    %1278 = vmatpush.bf16.msra.mxu0 %v1112
    %1279 = vmatpush.bf16.msra.mxu0 %v1108
    %1280 = vmatpush.bf16.msra.mxu0 %v1104
    %1281 = vmatpush.bf16.msra.mxu0 %v1100
    %1282 = vmatpush.bf16.msra.mxu0 %v1096
    %1283 = vmatpush.bf16.msra.mxu0 %v1092
    %1284 = vmatmul.bf16.gmra.mxu0 %v788
    %v1285 = vpop.f32.mrf.mxu0
    %v1286 = vadd.f32 %v1273, %v1285
    %v1287 = vpop.f32.mrf.mxu0
    %1288 = vdwg.mxu0
    %v1289 = vxor.u32 %v1208, 2147483648
    %v1290 = vmul.f32 %v1289, 1.442695
    %v1291 = vpow.pop %v1290
    %v1292 = vadd.f32 %v1291, 1.0
    %v1293 = vrcp.pop %v1292
    %v1294 = vmul.f32 %v1292, %v1293
    %v1295 = vsub.f32 1.0, %v1294
    %v1296 = vmul.f32 %v1293, %v1295
    %v1297 = vadd.f32 %v1293, %v1296
    %vm1298 = vweird.f32 %v1292
    %vm1299 = vweird.f32 %v1293
    %vm1300 = vmor %vm1298, %vm1299
    %v1301 = vsel %vm1300, %v1293, %v1297
    %v1302 = vand.u32 2147483647, %v1292
    %vm1303 = vcmp.eq.f32.partialorder %v1302, 8.507059e+37
    %v1304 = vand.u32 %v1292, 2147483648
    %v1305 = vor.u32 1.1754944e-38, %v1304
    %v1306 = vsel %vm1303, %v1305, %v1301
    %v1307 = vmul.f32 1.0, %v1306
    %v1308 = vxor.u32 %v1234, 2147483648
    %v1309 = vmul.f32 %v1308, 1.442695
    %v1310 = vpow.pop %v1309
    %v1311 = vadd.f32 %v1310, 1.0
    %v1312 = vrcp.pop %v1311
    %v1313 = vmul.f32 %v1311, %v1312
    %v1314 = vsub.f32 1.0, %v1313
    %v1315 = vmul.f32 %v1312, %v1314
    %v1316 = vadd.f32 %v1312, %v1315
    %vm1317 = vweird.f32 %v1311
    %vm1318 = vweird.f32 %v1312
    %vm1319 = vmor %vm1317, %vm1318
    %v1320 = vsel %vm1319, %v1312, %v1316
    %v1321 = vand.u32 2147483647, %v1311
    %vm1322 = vcmp.eq.f32.partialorder %v1321, 8.507059e+37
    %v1323 = vand.u32 %v1311, 2147483648
    %v1324 = vor.u32 1.1754944e-38, %v1323
    %v1325 = vsel %vm1322, %v1324, %v1320
    %v1326 = vmul.f32 1.0, %v1325
    %v1327 = vtanh.pop %v1260
    %v1328 = vxor.u32 %v1286, 2147483648
    %v1329 = vmul.f32 %v1328, 1.442695
    %v1330 = vpow.pop %v1329
    %v1331 = vadd.f32 %v1330, 1.0
    %v1332 = vrcp.pop %v1331
    %v1333 = vmul.f32 %v1331, %v1332
    %v1334 = vsub.f32 1.0, %v1333
    %v1335 = vmul.f32 %v1332, %v1334
    %v1336 = vadd.f32 %v1332, %v1335
    %vm1337 = vweird.f32 %v1331
    %vm1338 = vweird.f32 %v1332
    %vm1339 = vmor %vm1337, %vm1338
    %v1340 = vsel %vm1339, %v1332, %v1336
    %v1341 = vand.u32 2147483647, %v1331
    %vm1342 = vcmp.eq.f32.partialorder %v1341, 8.507059e+37
    %v1343 = vand.u32 %v1331, 2147483648
    %v1344 = vor.u32 1.1754944e-38, %v1343
    %v1345 = vsel %vm1342, %v1344, %v1340
    %v1346 = vmul.f32 1.0, %v1345
    %v1347 = vmul.f32 %v1326, %v786
    %v1348 = vmul.f32 %v1307, %v1327
    %v1349 = vadd.f32 %v1347, %v1348
    %v1350 = vtanh.pop %v1349
    %v1351 = vmul.f32 %v1346, %v1350
    %s1352 = scalar_lea.vmem [#allocation20], 8
    %1353 = vst [vmem:[%s1352] sm:$0xff] %v1351
    %s1354 = scalar_lea.vmem [#allocation22], 8
    %1355 = vst [vmem:[%s1354] sm:$0xff] %v1349
    %v1356 = vld [vmem:[#allocation14] sm:$0xff]
    %v1357 = vld [vmem:[#allocation14 + $0x8] sm:$0xff]
    %v1358 = vld [vmem:[#allocation14 + $0x10] sm:$0xff]
    %v1359 = vld [vmem:[#allocation14 + $0x18] sm:$0xff]
    %v1360 = vld [vmem:[#allocation14 + $0x20] sm:$0xff]
    %v1361 = vld [vmem:[#allocation14 + $0x28] sm:$0xff]
    %v1362 = vld [vmem:[#allocation14 + $0x30] sm:$0xff]
    %v1363 = vld [vmem:[#allocation14 + $0x38] sm:$0xff]
    %v1364 = vld [vmem:[#allocation14 + $0x40] sm:$0xff]
    %v1365 = vld [vmem:[#allocation14 + $0x48] sm:$0xff]
    %v1366 = vld [vmem:[#allocation14 + $0x50] sm:$0xff]
    %v1367 = vld [vmem:[#allocation14 + $0x58] sm:$0xff]
    %v1368 = vld [vmem:[#allocation14 + $0x60] sm:$0xff]
    %v1369 = vld [vmem:[#allocation14 + $0x68] sm:$0xff]
    %v1370 = vld [vmem:[#allocation14 + $0x70] sm:$0xff]
    %v1371 = vld [vmem:[#allocation14 + $0x78] sm:$0xff]
    %v1373 = vrot.slane %v1351, 1
    %v1374 = vrot.slane %v1351, 2
    %v1375 = vrot.slane %v1351, 3
    %v1376 = vrot.slane %v1351, 4
    %v1377 = vrot.slane %v1351, 5
    %v1378 = vrot.slane %v1351, 6
    %v1379 = vrot.slane %v1351, 7
    %v1380 = vperm.slane %v1351, 0
    %v1381 = vperm.slane %v1373, 0
    %v1382 = vperm.slane %v1374, 0
    %v1383 = vperm.slane %v1375, 0
    %v1384 = vperm.slane %v1376, 0
    %v1385 = vperm.slane %v1377, 0
    %v1386 = vperm.slane %v1378, 0
    %v1387 = vperm.slane %v1379, 0
    %v1396 = vmul.f32 %v1380, %v1356
    %v1397 = vmul.f32 %v1380, %v1357
    %v1398 = vmul.f32 %v1381, %v1358
    %v1399 = vmul.f32 %v1381, %v1359
    %v1400 = vmul.f32 %v1382, %v1360
    %v1401 = vmul.f32 %v1382, %v1361
    %v1402 = vmul.f32 %v1383, %v1362
    %v1403 = vmul.f32 %v1383, %v1363
    %v1404 = vmul.f32 %v1384, %v1364
    %v1405 = vmul.f32 %v1384, %v1365
    %v1406 = vmul.f32 %v1385, %v1366
    %v1407 = vmul.f32 %v1385, %v1367
    %v1408 = vmul.f32 %v1386, %v1368
    %v1409 = vmul.f32 %v1386, %v1369
    %v1410 = vmul.f32 %v1387, %v1370
    %v1411 = vmul.f32 %v1387, %v1371
    %1412 = vadd.xlane.f32.xlu0 %v1396
    %v1413 = vpop.xlane.xlu0 %1412
    %1414 = vadd.xlane.f32.xlu0 %v1397
    %v1415 = vpop.xlane.xlu0 %1414
    %1416 = vadd.xlane.f32.xlu0 %v1398
    %v1417 = vpop.xlane.xlu0 %1416
    %1418 = vadd.xlane.f32.xlu0 %v1399
    %v1419 = vpop.xlane.xlu0 %1418
    %1420 = vadd.xlane.f32.xlu0 %v1400
    %v1421 = vpop.xlane.xlu0 %1420
    %1422 = vadd.xlane.f32.xlu0 %v1401
    %v1423 = vpop.xlane.xlu0 %1422
    %1424 = vadd.xlane.f32.xlu0 %v1402
    %v1425 = vpop.xlane.xlu0 %1424
    %1426 = vadd.xlane.f32.xlu0 %v1403
    %v1427 = vpop.xlane.xlu0 %1426
    %1428 = vadd.xlane.f32.xlu0 %v1404
    %v1429 = vpop.xlane.xlu0 %1428
    %1430 = vadd.xlane.f32.xlu0 %v1405
    %v1431 = vpop.xlane.xlu0 %1430
    %1432 = vadd.xlane.f32.xlu0 %v1406
    %v1433 = vpop.xlane.xlu0 %1432
    %1434 = vadd.xlane.f32.xlu0 %v1407
    %v1435 = vpop.xlane.xlu0 %1434
    %1436 = vadd.xlane.f32.xlu0 %v1408
    %v1437 = vpop.xlane.xlu0 %1436
    %1438 = vadd.xlane.f32.xlu0 %v1409
    %v1439 = vpop.xlane.xlu0 %1438
    %1440 = vadd.xlane.f32.xlu0 %v1410
    %v1441 = vpop.xlane.xlu0 %1440
    %1442 = vadd.xlane.f32.xlu0 %v1411
    %v1443 = vpop.xlane.xlu0 %1442
    %v1460 = vlaneseq
    %v1461 = vand.u32 %v1460, 127
    %v1462 = vperm.slane %v1413, %v1461
    %v1463 = vadd.s32 %v1461, 4294967288
    %v1464 = vperm.slane %v1415, %v1463
    %vm1465 = vcmask 130112
    %v1466 = vsel %vm1465, %v1464, %v1462
    %v1467 = vperm.slane %v1417, %v1461
    %v1468 = vperm.slane %v1419, %v1463
    %v1469 = vsel %vm1465, %v1468, %v1467
    %v1470 = vperm.slane %v1421, %v1461
    %v1471 = vperm.slane %v1423, %v1463
    %v1472 = vsel %vm1465, %v1471, %v1470
    %v1473 = vperm.slane %v1425, %v1461
    %v1474 = vperm.slane %v1427, %v1463
    %v1475 = vsel %vm1465, %v1474, %v1473
    %v1476 = vperm.slane %v1429, %v1461
    %v1477 = vperm.slane %v1431, %v1463
    %v1478 = vsel %vm1465, %v1477, %v1476
    %v1479 = vperm.slane %v1433, %v1461
    %v1480 = vperm.slane %v1435, %v1463
    %v1481 = vsel %vm1465, %v1480, %v1479
    %v1482 = vperm.slane %v1437, %v1461
    %v1483 = vperm.slane %v1439, %v1463
    %v1484 = vsel %vm1465, %v1483, %v1482
    %v1485 = vperm.slane %v1441, %v1461
    %v1486 = vperm.slane %v1443, %v1463
    %v1487 = vsel %vm1465, %v1486, %v1485
    %vm1488 = vcmask 1041409
    %v1489 = vsel %vm1488, %v1469, %v1466
    %vm1490 = vcmask 1042434
    %v1491 = vsel %vm1490, %v1472, %v1489
    %vm1492 = vcmask 1043459
    %v1493 = vsel %vm1492, %v1475, %v1491
    %vm1494 = vcmask 1044484
    %v1495 = vsel %vm1494, %v1478, %v1493
    %vm1496 = vcmask 1045509
    %v1497 = vsel %vm1496, %v1481, %v1495
    %vm1498 = vcmask 1046534
    %v1499 = vsel %vm1498, %v1484, %v1497
    %vm1500 = vcmask 1047559
    %v1501 = vsel %vm1500, %v1487, %v1499
    %vm1503 = vcmask 130048
    %v1504 = vsel %vm1503, %v1501, -inf
    %1505 = vmax.xlane.f32.xlu0 %v1504
    %v1506 = vpop.xlane.xlu0 %1505
    %v1508 = vperm.slane %v1506, 0
    %v1509 = vperm.slane %v1506, 1
    %v1510 = vperm.slane %v1506, 2
    %v1511 = vperm.slane %v1506, 3
    %v1512 = vperm.slane %v1506, 4
    %v1513 = vperm.slane %v1506, 5
    %v1514 = vperm.slane %v1506, 6
    %v1515 = vperm.slane %v1506, 7
    %v1524 = vsub.f32 %v1413, %v1508
    %v1525 = vsub.f32 %v1415, %v1508
    %v1526 = vsub.f32 %v1417, %v1509
    %v1527 = vsub.f32 %v1419, %v1509
    %v1528 = vsub.f32 %v1421, %v1510
    %v1529 = vsub.f32 %v1423, %v1510
    %v1530 = vsub.f32 %v1425, %v1511
    %v1531 = vsub.f32 %v1427, %v1511
    %v1532 = vsub.f32 %v1429, %v1512
    %v1533 = vsub.f32 %v1431, %v1512
    %v1534 = vsub.f32 %v1433, %v1513
    %v1535 = vsub.f32 %v1435, %v1513
    %v1536 = vsub.f32 %v1437, %v1514
    %v1537 = vsub.f32 %v1439, %v1514
    %v1538 = vsub.f32 %v1441, %v1515
    %v1539 = vsub.f32 %v1443, %v1515
    %v1540 = vmul.f32 %v1524, 1.442695
    %v1541 = vpow.pop %v1540
    %v1542 = vmul.f32 %v1525, 1.442695
    %v1543 = vpow.pop %v1542
    %v1544 = vmul.f32 %v1526, 1.442695
    %v1545 = vpow.pop %v1544
    %v1546 = vmul.f32 %v1527, 1.442695
    %v1547 = vpow.pop %v1546
    %v1548 = vmul.f32 %v1528, 1.442695
    %v1549 = vpow.pop %v1548
    %v1550 = vmul.f32 %v1529, 1.442695
    %v1551 = vpow.pop %v1550
    %v1552 = vmul.f32 %v1530, 1.442695
    %v1553 = vpow.pop %v1552
    %v1554 = vmul.f32 %v1531, 1.442695
    %v1555 = vpow.pop %v1554
    %v1556 = vmul.f32 %v1532, 1.442695
    %v1557 = vpow.pop %v1556
    %v1558 = vmul.f32 %v1533, 1.442695
    %v1559 = vpow.pop %v1558
    %v1560 = vmul.f32 %v1534, 1.442695
    %v1561 = vpow.pop %v1560
    %v1562 = vmul.f32 %v1535, 1.442695
    %v1563 = vpow.pop %v1562
    %v1564 = vmul.f32 %v1536, 1.442695
    %v1565 = vpow.pop %v1564
    %v1566 = vmul.f32 %v1537, 1.442695
    %v1567 = vpow.pop %v1566
    %v1568 = vmul.f32 %v1538, 1.442695
    %v1569 = vpow.pop %v1568
    %v1570 = vmul.f32 %v1539, 1.442695
    %v1571 = vpow.pop %v1570
    %1588 = vset.pattern.permute.xlu0 0
    %1589 = vperm.xlu0 %1588, %v1541
    %v1590 = vpop.permute.xlu0 %1589
    %1591 = vset.pattern.permute.xlu0 0
    %1592 = vperm.xlu0 %1591, %v1543
    %v1593 = vpop.permute.xlu0 %1592
    %1594 = vset.pattern.permute.xlu0 0
    %1595 = vperm.xlu0 %1594, %v1545
    %v1596 = vpop.permute.xlu0 %1595
    %1597 = vset.pattern.permute.xlu0 0
    %1598 = vperm.xlu0 %1597, %v1547
    %v1599 = vpop.permute.xlu0 %1598
    %1600 = vset.pattern.permute.xlu0 0
    %1601 = vperm.xlu0 %1600, %v1549
    %v1602 = vpop.permute.xlu0 %1601
    %1603 = vset.pattern.permute.xlu0 0
    %1604 = vperm.xlu0 %1603, %v1551
    %v1605 = vpop.permute.xlu0 %1604
    %1606 = vset.pattern.permute.xlu0 0
    %1607 = vperm.xlu0 %1606, %v1553
    %v1608 = vpop.permute.xlu0 %1607
    %1609 = vset.pattern.permute.xlu0 0
    %1610 = vperm.xlu0 %1609, %v1555
    %v1611 = vpop.permute.xlu0 %1610
    %1612 = vset.pattern.permute.xlu0 0
    %1613 = vperm.xlu0 %1612, %v1557
    %v1614 = vpop.permute.xlu0 %1613
    %1615 = vset.pattern.permute.xlu0 0
    %1616 = vperm.xlu0 %1615, %v1559
    %v1617 = vpop.permute.xlu0 %1616
    %1618 = vset.pattern.permute.xlu0 0
    %1619 = vperm.xlu0 %1618, %v1561
    %v1620 = vpop.permute.xlu0 %1619
    %1621 = vset.pattern.permute.xlu0 0
    %1622 = vperm.xlu0 %1621, %v1563
    %v1623 = vpop.permute.xlu0 %1622
    %1624 = vset.pattern.permute.xlu0 0
    %1625 = vperm.xlu0 %1624, %v1565
    %v1626 = vpop.permute.xlu0 %1625
    %1627 = vset.pattern.permute.xlu0 0
    %1628 = vperm.xlu0 %1627, %v1567
    %v1629 = vpop.permute.xlu0 %1628
    %1630 = vset.pattern.permute.xlu0 0
    %1631 = vperm.xlu0 %1630, %v1569
    %v1632 = vpop.permute.xlu0 %1631
    %1633 = vset.pattern.permute.xlu0 0
    %1634 = vperm.xlu0 %1633, %v1571
    %v1635 = vpop.permute.xlu0 %1634
    %v1636 = vperm.slane %v1590, %v1461
    %v1637 = vperm.slane %v1593, %v1463
    %v1638 = vsel %vm1465, %v1637, %v1636
    %v1639 = vperm.slane %v1596, %v1461
    %v1640 = vperm.slane %v1599, %v1463
    %v1641 = vsel %vm1465, %v1640, %v1639
    %v1642 = vperm.slane %v1602, %v1461
    %v1643 = vperm.slane %v1605, %v1463
    %v1644 = vsel %vm1465, %v1643, %v1642
    %v1645 = vperm.slane %v1608, %v1461
    %v1646 = vperm.slane %v1611, %v1463
    %v1647 = vsel %vm1465, %v1646, %v1645
    %v1648 = vperm.slane %v1614, %v1461
    %v1649 = vperm.slane %v1617, %v1463
    %v1650 = vsel %vm1465, %v1649, %v1648
    %v1651 = vperm.slane %v1620, %v1461
    %v1652 = vperm.slane %v1623, %v1463
    %v1653 = vsel %vm1465, %v1652, %v1651
    %v1654 = vperm.slane %v1626, %v1461
    %v1655 = vperm.slane %v1629, %v1463
    %v1656 = vsel %vm1465, %v1655, %v1654
    %v1657 = vperm.slane %v1632, %v1461
    %v1658 = vperm.slane %v1635, %v1463
    %v1659 = vsel %vm1465, %v1658, %v1657
    %v1660 = vsel %vm1488, %v1641, %v1638
    %v1661 = vsel %vm1490, %v1644, %v1660
    %v1662 = vsel %vm1492, %v1647, %v1661
    %v1663 = vsel %vm1494, %v1650, %v1662
    %v1664 = vsel %vm1496, %v1653, %v1663
    %v1665 = vsel %vm1498, %v1656, %v1664
    %v1666 = vsel %vm1500, %v1659, %v1665
    %v1668 = vsel %vm1503, %v1666, 0.0
    %1669 = vadd.xlane.f32.xlu0 %v1668
    %v1670 = vpop.xlane.xlu0 %1669
    %v1672 = vperm.slane %v1670, 0
    %v1673 = vperm.slane %v1670, 1
    %v1674 = vperm.slane %v1670, 2
    %v1675 = vperm.slane %v1670, 3
    %v1676 = vperm.slane %v1670, 4
    %v1677 = vperm.slane %v1670, 5
    %v1678 = vperm.slane %v1670, 6
    %v1679 = vperm.slane %v1670, 7
    %v1688 = vrcp.pop %v1672
    %v1689 = vmul.f32 %v1672, %v1688
    %v1690 = vsub.f32 1.0, %v1689
    %v1691 = vmul.f32 %v1688, %v1690
    %v1692 = vadd.f32 %v1688, %v1691
    %vm1693 = vweird.f32 %v1672
    %vm1694 = vweird.f32 %v1688
    %vm1695 = vmor %vm1693, %vm1694
    %v1696 = vsel %vm1695, %v1688, %v1692
    %v1697 = vand.u32 2147483647, %v1672
    %vm1698 = vcmp.eq.f32.partialorder %v1697, 8.507059e+37
    %v1699 = vand.u32 %v1672, 2147483648
    %v1700 = vor.u32 1.1754944e-38, %v1699
    %v1701 = vsel %vm1698, %v1700, %v1696
    %v1702 = vmul.f32 %v1541, %v1701
    %v1703 = vmul.f32 %v1543, %v1701
    %v1704 = vrcp.pop %v1673
    %v1705 = vmul.f32 %v1673, %v1704
    %v1706 = vsub.f32 1.0, %v1705
    %v1707 = vmul.f32 %v1704, %v1706
    %v1708 = vadd.f32 %v1704, %v1707
    %vm1709 = vweird.f32 %v1673
    %vm1710 = vweird.f32 %v1704
    %vm1711 = vmor %vm1709, %vm1710
    %v1712 = vsel %vm1711, %v1704, %v1708
    %v1713 = vand.u32 2147483647, %v1673
    %vm1714 = vcmp.eq.f32.partialorder %v1713, 8.507059e+37
    %v1715 = vand.u32 %v1673, 2147483648
    %v1716 = vor.u32 1.1754944e-38, %v1715
    %v1717 = vsel %vm1714, %v1716, %v1712
    %v1718 = vmul.f32 %v1545, %v1717
    %v1719 = vmul.f32 %v1547, %v1717
    %v1720 = vrcp.pop %v1674
    %v1721 = vmul.f32 %v1674, %v1720
    %v1722 = vsub.f32 1.0, %v1721
    %v1723 = vmul.f32 %v1720, %v1722
    %v1724 = vadd.f32 %v1720, %v1723
    %vm1725 = vweird.f32 %v1674
    %vm1726 = vweird.f32 %v1720
    %vm1727 = vmor %vm1725, %vm1726
    %v1728 = vsel %vm1727, %v1720, %v1724
    %v1729 = vand.u32 2147483647, %v1674
    %vm1730 = vcmp.eq.f32.partialorder %v1729, 8.507059e+37
    %v1731 = vand.u32 %v1674, 2147483648
    %v1732 = vor.u32 1.1754944e-38, %v1731
    %v1733 = vsel %vm1730, %v1732, %v1728
    %v1734 = vmul.f32 %v1549, %v1733
    %v1735 = vmul.f32 %v1551, %v1733
    %v1736 = vrcp.pop %v1675
    %v1737 = vmul.f32 %v1675, %v1736
    %v1738 = vsub.f32 1.0, %v1737
    %v1739 = vmul.f32 %v1736, %v1738
    %v1740 = vadd.f32 %v1736, %v1739
    %vm1741 = vweird.f32 %v1675
    %vm1742 = vweird.f32 %v1736
    %vm1743 = vmor %vm1741, %vm1742
    %v1744 = vsel %vm1743, %v1736, %v1740
    %v1745 = vand.u32 2147483647, %v1675
    %vm1746 = vcmp.eq.f32.partialorder %v1745, 8.507059e+37
    %v1747 = vand.u32 %v1675, 2147483648
    %v1748 = vor.u32 1.1754944e-38, %v1747
    %v1749 = vsel %vm1746, %v1748, %v1744
    %v1750 = vmul.f32 %v1553, %v1749
    %v1751 = vmul.f32 %v1555, %v1749
    %v1752 = vrcp.pop %v1676
    %v1753 = vmul.f32 %v1676, %v1752
    %v1754 = vsub.f32 1.0, %v1753
    %v1755 = vmul.f32 %v1752, %v1754
    %v1756 = vadd.f32 %v1752, %v1755
    %vm1757 = vweird.f32 %v1676
    %vm1758 = vweird.f32 %v1752
    %vm1759 = vmor %vm1757, %vm1758
    %v1760 = vsel %vm1759, %v1752, %v1756
    %v1761 = vand.u32 2147483647, %v1676
    %vm1762 = vcmp.eq.f32.partialorder %v1761, 8.507059e+37
    %v1763 = vand.u32 %v1676, 2147483648
    %v1764 = vor.u32 1.1754944e-38, %v1763
    %v1765 = vsel %vm1762, %v1764, %v1760
    %v1766 = vmul.f32 %v1557, %v1765
    %v1767 = vmul.f32 %v1559, %v1765
    %v1768 = vrcp.pop %v1677
    %v1769 = vmul.f32 %v1677, %v1768
    %v1770 = vsub.f32 1.0, %v1769
    %v1771 = vmul.f32 %v1768, %v1770
    %v1772 = vadd.f32 %v1768, %v1771
    %vm1773 = vweird.f32 %v1677
    %vm1774 = vweird.f32 %v1768
    %vm1775 = vmor %vm1773, %vm1774
    %v1776 = vsel %vm1775, %v1768, %v1772
    %v1777 = vand.u32 2147483647, %v1677
    %vm1778 = vcmp.eq.f32.partialorder %v1777, 8.507059e+37
    %v1779 = vand.u32 %v1677, 2147483648
    %v1780 = vor.u32 1.1754944e-38, %v1779
    %v1781 = vsel %vm1778, %v1780, %v1776
    %v1782 = vmul.f32 %v1561, %v1781
    %v1783 = vmul.f32 %v1563, %v1781
    %v1784 = vrcp.pop %v1678
    %v1785 = vmul.f32 %v1678, %v1784
    %v1786 = vsub.f32 1.0, %v1785
    %v1787 = vmul.f32 %v1784, %v1786
    %v1788 = vadd.f32 %v1784, %v1787
    %vm1789 = vweird.f32 %v1678
    %vm1790 = vweird.f32 %v1784
    %vm1791 = vmor %vm1789, %vm1790
    %v1792 = vsel %vm1791, %v1784, %v1788
    %v1793 = vand.u32 2147483647, %v1678
    %vm1794 = vcmp.eq.f32.partialorder %v1793, 8.507059e+37
    %v1795 = vand.u32 %v1678, 2147483648
    %v1796 = vor.u32 1.1754944e-38, %v1795
    %v1797 = vsel %vm1794, %v1796, %v1792
    %v1798 = vmul.f32 %v1565, %v1797
    %v1799 = vmul.f32 %v1567, %v1797
    %v1800 = vrcp.pop %v1679
    %v1801 = vmul.f32 %v1679, %v1800
    %v1802 = vsub.f32 1.0, %v1801
    %v1803 = vmul.f32 %v1800, %v1802
    %v1804 = vadd.f32 %v1800, %v1803
    %vm1805 = vweird.f32 %v1679
    %vm1806 = vweird.f32 %v1800
    %vm1807 = vmor %vm1805, %vm1806
    %v1808 = vsel %vm1807, %v1800, %v1804
    %v1809 = vand.u32 2147483647, %v1679
    %vm1810 = vcmp.eq.f32.partialorder %v1809, 8.507059e+37
    %v1811 = vand.u32 %v1679, 2147483648
    %v1812 = vor.u32 1.1754944e-38, %v1811
    %v1813 = vsel %vm1810, %v1812, %v1808
    %v1814 = vmul.f32 %v1569, %v1813
    %v1815 = vmul.f32 %v1571, %v1813
    %1832 = vset.pattern.permute.xlu0 0
    %1833 = vperm.xlu0 %1832, %v1702
    %v1834 = vpop.permute.xlu0 %1833
    %1835 = vset.pattern.permute.xlu0 0
    %1836 = vperm.xlu0 %1835, %v1703
    %v1837 = vpop.permute.xlu0 %1836
    %1838 = vset.pattern.permute.xlu0 0
    %1839 = vperm.xlu0 %1838, %v1718
    %v1840 = vpop.permute.xlu0 %1839
    %1841 = vset.pattern.permute.xlu0 0
    %1842 = vperm.xlu0 %1841, %v1719
    %v1843 = vpop.permute.xlu0 %1842
    %1844 = vset.pattern.permute.xlu0 0
    %1845 = vperm.xlu0 %1844, %v1734
    %v1846 = vpop.permute.xlu0 %1845
    %1847 = vset.pattern.permute.xlu0 0
    %1848 = vperm.xlu0 %1847, %v1735
    %v1849 = vpop.permute.xlu0 %1848
    %1850 = vset.pattern.permute.xlu0 0
    %1851 = vperm.xlu0 %1850, %v1750
    %v1852 = vpop.permute.xlu0 %1851
    %1853 = vset.pattern.permute.xlu0 0
    %1854 = vperm.xlu0 %1853, %v1751
    %v1855 = vpop.permute.xlu0 %1854
    %1856 = vset.pattern.permute.xlu0 0
    %1857 = vperm.xlu0 %1856, %v1766
    %v1858 = vpop.permute.xlu0 %1857
    %1859 = vset.pattern.permute.xlu0 0
    %1860 = vperm.xlu0 %1859, %v1767
    %v1861 = vpop.permute.xlu0 %1860
    %1862 = vset.pattern.permute.xlu0 0
    %1863 = vperm.xlu0 %1862, %v1782
    %v1864 = vpop.permute.xlu0 %1863
    %1865 = vset.pattern.permute.xlu0 0
    %1866 = vperm.xlu0 %1865, %v1783
    %v1867 = vpop.permute.xlu0 %1866
    %1868 = vset.pattern.permute.xlu0 0
    %1869 = vperm.xlu0 %1868, %v1798
    %v1870 = vpop.permute.xlu0 %1869
    %1871 = vset.pattern.permute.xlu0 0
    %1872 = vperm.xlu0 %1871, %v1799
    %v1873 = vpop.permute.xlu0 %1872
    %1874 = vset.pattern.permute.xlu0 0
    %1875 = vperm.xlu0 %1874, %v1814
    %v1876 = vpop.permute.xlu0 %1875
    %1877 = vset.pattern.permute.xlu0 0
    %1878 = vperm.xlu0 %1877, %v1815
    %v1879 = vpop.permute.xlu0 %1878
    %v1880 = vperm.slane %v1834, %v1461
    %v1881 = vperm.slane %v1837, %v1463
    %v1882 = vsel %vm1465, %v1881, %v1880
    %v1883 = vperm.slane %v1840, %v1461
    %v1884 = vperm.slane %v1843, %v1463
    %v1885 = vsel %vm1465, %v1884, %v1883
    %v1886 = vperm.slane %v1846, %v1461
    %v1887 = vperm.slane %v1849, %v1463
    %v1888 = vsel %vm1465, %v1887, %v1886
    %v1889 = vperm.slane %v1852, %v1461
    %v1890 = vperm.slane %v1855, %v1463
    %v1891 = vsel %vm1465, %v1890, %v1889
    %v1892 = vperm.slane %v1858, %v1461
    %v1893 = vperm.slane %v1861, %v1463
    %v1894 = vsel %vm1465, %v1893, %v1892
    %v1895 = vperm.slane %v1864, %v1461
    %v1896 = vperm.slane %v1867, %v1463
    %v1897 = vsel %vm1465, %v1896, %v1895
    %v1898 = vperm.slane %v1870, %v1461
    %v1899 = vperm.slane %v1873, %v1463
    %v1900 = vsel %vm1465, %v1899, %v1898
    %v1901 = vperm.slane %v1876, %v1461
    %v1902 = vperm.slane %v1879, %v1463
    %v1903 = vsel %vm1465, %v1902, %v1901
    %v1904 = vsel %vm1488, %v1885, %v1882
    %v1905 = vsel %vm1490, %v1888, %v1904
    %v1906 = vsel %vm1492, %v1891, %v1905
    %v1907 = vsel %vm1494, %v1894, %v1906
    %v1908 = vsel %vm1496, %v1897, %v1907
    %v1909 = vsel %vm1498, %v1900, %v1908
    %v1910 = vsel %vm1500, %v1903, %v1909
    %1912 = vst.msk [vmem:[#allocation23] sm:$0xff] %vm1503, %v1910
    %v1929 = vmul.f32 %v1834, %v1356
    %v1930 = vmul.f32 %v1837, %v1357
    %v1931 = vmul.f32 %v1840, %v1358
    %v1932 = vmul.f32 %v1843, %v1359
    %v1933 = vmul.f32 %v1846, %v1360
    %v1934 = vmul.f32 %v1849, %v1361
    %v1935 = vmul.f32 %v1852, %v1362
    %v1936 = vmul.f32 %v1855, %v1363
    %v1937 = vmul.f32 %v1858, %v1364
    %v1938 = vmul.f32 %v1861, %v1365
    %v1939 = vmul.f32 %v1864, %v1366
    %v1940 = vmul.f32 %v1867, %v1367
    %v1941 = vmul.f32 %v1870, %v1368
    %v1942 = vmul.f32 %v1873, %v1369
    %v1943 = vmul.f32 %v1876, %v1370
    %v1944 = vmul.f32 %v1879, %v1371
    %v1945 = vadd.f32 %v1929, %v1930
    %v1946 = vrot.slane %v1945, 4
    %v1947 = vadd.f32 %v1945, %v1946
    %v1948 = vrot.slane %v1947, 2
    %v1949 = vadd.f32 %v1947, %v1948
    %v1950 = vrot.slane %v1949, 1
    %v1951 = vadd.f32 %v1949, %v1950
    %v1952 = vadd.f32 %v1931, %v1932
    %v1953 = vrot.slane %v1952, 4
    %v1954 = vadd.f32 %v1952, %v1953
    %v1955 = vrot.slane %v1954, 2
    %v1956 = vadd.f32 %v1954, %v1955
    %v1957 = vrot.slane %v1956, 1
    %v1958 = vadd.f32 %v1956, %v1957
    %v1959 = vadd.f32 %v1933, %v1934
    %v1960 = vrot.slane %v1959, 4
    %v1961 = vadd.f32 %v1959, %v1960
    %v1962 = vrot.slane %v1961, 2
    %v1963 = vadd.f32 %v1961, %v1962
    %v1964 = vrot.slane %v1963, 1
    %v1965 = vadd.f32 %v1963, %v1964
    %v1966 = vadd.f32 %v1935, %v1936
    %v1967 = vrot.slane %v1966, 4
    %v1968 = vadd.f32 %v1966, %v1967
    %v1969 = vrot.slane %v1968, 2
    %v1970 = vadd.f32 %v1968, %v1969
    %v1971 = vrot.slane %v1970, 1
    %v1972 = vadd.f32 %v1970, %v1971
    %v1973 = vadd.f32 %v1937, %v1938
    %v1974 = vrot.slane %v1973, 4
    %v1975 = vadd.f32 %v1973, %v1974
    %v1976 = vrot.slane %v1975, 2
    %v1977 = vadd.f32 %v1975, %v1976
    %v1978 = vrot.slane %v1977, 1
    %v1979 = vadd.f32 %v1977, %v1978
    %v1980 = vadd.f32 %v1939, %v1940
    %v1981 = vrot.slane %v1980, 4
    %v1982 = vadd.f32 %v1980, %v1981
    %v1983 = vrot.slane %v1982, 2
    %v1984 = vadd.f32 %v1982, %v1983
    %v1985 = vrot.slane %v1984, 1
    %v1986 = vadd.f32 %v1984, %v1985
    %v1987 = vadd.f32 %v1941, %v1942
    %v1988 = vrot.slane %v1987, 4
    %v1989 = vadd.f32 %v1987, %v1988
    %v1990 = vrot.slane %v1989, 2
    %v1991 = vadd.f32 %v1989, %v1990
    %v1992 = vrot.slane %v1991, 1
    %v1993 = vadd.f32 %v1991, %v1992
    %v1994 = vadd.f32 %v1943, %v1944
    %v1995 = vrot.slane %v1994, 4
    %v1996 = vadd.f32 %v1994, %v1995
    %v1997 = vrot.slane %v1996, 2
    %v1998 = vadd.f32 %v1996, %v1997
    %v1999 = vrot.slane %v1998, 1
    %v2000 = vadd.f32 %v1998, %v1999
    %v2009 = vsel %vm1488, %v1958, %v1951
    %v2010 = vsel %vm1490, %v1965, %v2009
    %v2011 = vsel %vm1492, %v1972, %v2010
    %v2012 = vsel %vm1494, %v1979, %v2011
    %v2013 = vsel %vm1496, %v1986, %v2012
    %v2014 = vsel %vm1498, %v1993, %v2013
    %v2015 = vsel %vm1500, %v2000, %v2014
    %v2017 = vpack.c.bf16 %v1351, %v1351
    %v2018 = vpack.c.bf16 %v2015, %v2015
    %v2019 = vld [vmem:[#allocation16] sm:$0xf]
    %v2020 = vld [vmem:[#allocation16 + $0x4] sm:$0xf]
    %v2021 = vld [vmem:[#allocation16 + $0x8] sm:$0xf]
    %v2022 = vld [vmem:[#allocation16 + $0xc] sm:$0xf]
    %v2023 = vld [vmem:[#allocation16 + $0x10] sm:$0xf]
    %v2024 = vld [vmem:[#allocation16 + $0x14] sm:$0xf]
    %v2025 = vld [vmem:[#allocation16 + $0x18] sm:$0xf]
    %v2026 = vld [vmem:[#allocation16 + $0x1c] sm:$0xf]
    %v2027 = vld [vmem:[#allocation16 + $0x20] sm:$0xf]
    %v2028 = vld [vmem:[#allocation16 + $0x24] sm:$0xf]
    %v2029 = vld [vmem:[#allocation16 + $0x28] sm:$0xf]
    %v2030 = vld [vmem:[#allocation16 + $0x2c] sm:$0xf]
    %v2031 = vld [vmem:[#allocation16 + $0x30] sm:$0xf]
    %v2032 = vld [vmem:[#allocation16 + $0x34] sm:$0xf]
    %v2033 = vld [vmem:[#allocation16 + $0x38] sm:$0xf]
    %v2034 = vld [vmem:[#allocation16 + $0x3c] sm:$0xf]
    %v2035 = vld [vmem:[#allocation16 + $0x40] sm:$0xf]
    %v2036 = vld [vmem:[#allocation16 + $0x44] sm:$0xf]
    %v2037 = vld [vmem:[#allocation16 + $0x48] sm:$0xf]
    %v2038 = vld [vmem:[#allocation16 + $0x4c] sm:$0xf]
    %v2039 = vld [vmem:[#allocation16 + $0x50] sm:$0xf]
    %v2040 = vld [vmem:[#allocation16 + $0x54] sm:$0xf]
    %v2041 = vld [vmem:[#allocation16 + $0x58] sm:$0xf]
    %v2042 = vld [vmem:[#allocation16 + $0x5c] sm:$0xf]
    %v2043 = vld [vmem:[#allocation16 + $0x60] sm:$0xf]
    %v2044 = vld [vmem:[#allocation16 + $0x64] sm:$0xf]
    %v2045 = vld [vmem:[#allocation16 + $0x68] sm:$0xf]
    %v2046 = vld [vmem:[#allocation16 + $0x6c] sm:$0xf]
    %v2047 = vld [vmem:[#allocation16 + $0x70] sm:$0xf]
    %v2048 = vld [vmem:[#allocation16 + $0x74] sm:$0xf]
    %v2049 = vld [vmem:[#allocation16 + $0x78] sm:$0xf]
    %v2050 = vld [vmem:[#allocation16 + $0x7c] sm:$0xf]
    %v2051 = vld [vmem:[%s8] sm:$0x1]
    %v2053 = vperm.slane %v2051, 0
    %v2087 = vunpack.c.l.b16 %v2019
    %v2088 = vunpack.c.l.b16 %v2020
    %v2089 = vunpack.c.l.b16 %v2021
    %v2090 = vunpack.c.l.b16 %v2022
    %v2091 = vunpack.c.l.b16 %v2023
    %v2092 = vunpack.c.l.b16 %v2024
    %v2093 = vunpack.c.l.b16 %v2025
    %v2094 = vunpack.c.l.b16 %v2026
    %v2095 = vunpack.c.l.b16 %v2027
    %v2096 = vunpack.c.l.b16 %v2028
    %v2097 = vunpack.c.l.b16 %v2029
    %v2098 = vunpack.c.l.b16 %v2030
    %v2099 = vunpack.c.l.b16 %v2031
    %v2100 = vunpack.c.l.b16 %v2032
    %v2101 = vunpack.c.l.b16 %v2033
    %v2102 = vunpack.c.l.b16 %v2034
    %v2103 = vunpack.c.l.b16 %v2035
    %v2104 = vunpack.c.l.b16 %v2036
    %v2105 = vunpack.c.l.b16 %v2037
    %v2106 = vunpack.c.l.b16 %v2038
    %v2107 = vunpack.c.l.b16 %v2039
    %v2108 = vunpack.c.l.b16 %v2040
    %v2109 = vunpack.c.l.b16 %v2041
    %v2110 = vunpack.c.l.b16 %v2042
    %v2111 = vunpack.c.l.b16 %v2043
    %v2112 = vunpack.c.l.b16 %v2044
    %v2113 = vunpack.c.l.b16 %v2045
    %v2114 = vunpack.c.l.b16 %v2046
    %v2115 = vunpack.c.l.b16 %v2047
    %v2116 = vunpack.c.l.b16 %v2048
    %v2117 = vunpack.c.l.b16 %v2049
    %v2118 = vunpack.c.l.b16 %v2050
    %v2119 = vpack.c.b16 %v2088, %v2087
    %v2120 = vpack.c.b16 %v2090, %v2089
    %v2121 = vpack.c.b16 %v2092, %v2091
    %v2122 = vpack.c.b16 %v2094, %v2093
    %v2123 = vpack.c.b16 %v2096, %v2095
    %v2124 = vpack.c.b16 %v2098, %v2097
    %v2125 = vpack.c.b16 %v2100, %v2099
    %v2126 = vpack.c.b16 %v2102, %v2101
    %v2127 = vpack.c.b16 %v2104, %v2103
    %v2128 = vpack.c.b16 %v2106, %v2105
    %v2129 = vpack.c.b16 %v2108, %v2107
    %v2130 = vpack.c.b16 %v2110, %v2109
    %v2131 = vpack.c.b16 %v2112, %v2111
    %v2132 = vpack.c.b16 %v2114, %v2113
    %v2133 = vpack.c.b16 %v2116, %v2115
    %v2134 = vpack.c.b16 %v2118, %v2117
    %2151 = vmatpush.bf16.msra.mxu0 %v2126
    %2152 = vmatpush.bf16.msra.mxu0 %v2125
    %2153 = vmatpush.bf16.msra.mxu0 %v2124
    %2154 = vmatpush.bf16.msra.mxu0 %v2123
    %2155 = vmatpush.bf16.msra.mxu0 %v2122
    %2156 = vmatpush.bf16.msra.mxu0 %v2121
    %2157 = vmatpush.bf16.msra.mxu0 %v2120
    %2158 = vmatpush.bf16.msra.mxu0 %v2119
    %2159 = vmatmul.bf16.gmra.mxu0 %v2017
    %v2160 = vpop.f32.mrf.mxu0
    %v2161 = vadd.f32 %v2053, %v2160
    %v2162 = vpop.f32.mrf.mxu0
    %2163 = vdwg.mxu0
    %2164 = vmatpush.bf16.msra.mxu0 %v2134
    %2165 = vmatpush.bf16.msra.mxu0 %v2133
    %2166 = vmatpush.bf16.msra.mxu0 %v2132
    %2167 = vmatpush.bf16.msra.mxu0 %v2131
    %2168 = vmatpush.bf16.msra.mxu0 %v2130
    %2169 = vmatpush.bf16.msra.mxu0 %v2129
    %2170 = vmatpush.bf16.msra.mxu0 %v2128
    %2171 = vmatpush.bf16.msra.mxu0 %v2127
    %2172 = vmatmul.bf16.gmra.mxu0 %v2018
    %v2173 = vpop.f32.mrf.mxu0
    %v2174 = vadd.f32 %v2161, %v2173
    %v2175 = vpop.f32.mrf.mxu0
    %2176 = vdwg.mxu0
    %v2177 = vtanh.pop %v2174
    %v2178 = vpack.c.bf16 %v2177, %v2177
    %v2179 = vld [vmem:[#allocation17] sm:$0xff]
    %v2180 = vld [vmem:[#allocation17 + $0x8] sm:$0xff]
    %v2181 = vld [vmem:[#allocation17 + $0x10] sm:$0xff]
    %v2182 = vld [vmem:[#allocation17 + $0x18] sm:$0xff]
    %v2183 = vld [vmem:[#allocation17 + $0x20] sm:$0xff]
    %v2184 = vld [vmem:[#allocation17 + $0x28] sm:$0xff]
    %v2185 = vld [vmem:[#allocation17 + $0x30] sm:$0xff]
    %v2186 = vld [vmem:[#allocation17 + $0x38] sm:$0xff]
    %v2187 = vld [vmem:[#allocation17 + $0x40] sm:$0xff]
    %v2188 = vld [vmem:[#allocation17 + $0x48] sm:$0xff]
    %v2189 = vld [vmem:[#allocation17 + $0x50] sm:$0xff]
    %v2190 = vld [vmem:[#allocation17 + $0x58] sm:$0xff]
    %v2191 = vld [vmem:[#allocation17 + $0x60] sm:$0xff]
    %v2192 = vld [vmem:[#allocation17 + $0x68] sm:$0xff]
    %v2193 = vld [vmem:[#allocation17 + $0x70] sm:$0xff]
    %v2194 = vld [vmem:[#allocation17 + $0x78] sm:$0xff]
    %v2195 = vld [vmem:[%s10] sm:$0x3]
    %v2197 = vperm.slane %v2195, 0
    %v2198 = vperm.slane %v2195, 1
    %v2217 = vunpack.c.l.b16 %v2179
    %v2218 = vunpack.c.h.b16 %v2179
    %v2219 = vunpack.c.l.b16 %v2180
    %v2220 = vunpack.c.h.b16 %v2180
    %v2221 = vunpack.c.l.b16 %v2181
    %v2222 = vunpack.c.h.b16 %v2181
    %v2223 = vunpack.c.l.b16 %v2182
    %v2224 = vunpack.c.h.b16 %v2182
    %v2225 = vunpack.c.l.b16 %v2183
    %v2226 = vunpack.c.h.b16 %v2183
    %v2227 = vunpack.c.l.b16 %v2184
    %v2228 = vunpack.c.h.b16 %v2184
    %v2229 = vunpack.c.l.b16 %v2185
    %v2230 = vunpack.c.h.b16 %v2185
    %v2231 = vunpack.c.l.b16 %v2186
    %v2232 = vunpack.c.h.b16 %v2186
    %v2233 = vunpack.c.l.b16 %v2187
    %v2234 = vunpack.c.h.b16 %v2187
    %v2235 = vunpack.c.l.b16 %v2188
    %v2236 = vunpack.c.h.b16 %v2188
    %v2237 = vunpack.c.l.b16 %v2189
    %v2238 = vunpack.c.h.b16 %v2189
    %v2239 = vunpack.c.l.b16 %v2190
    %v2240 = vunpack.c.h.b16 %v2190
    %v2241 = vunpack.c.l.b16 %v2191
    %v2242 = vunpack.c.h.b16 %v2191
    %v2243 = vunpack.c.l.b16 %v2192
    %v2244 = vunpack.c.h.b16 %v2192
    %v2245 = vunpack.c.l.b16 %v2193
    %v2246 = vunpack.c.h.b16 %v2193
    %v2247 = vunpack.c.l.b16 %v2194
    %v2248 = vunpack.c.h.b16 %v2194
    %v2249 = vpack.c.b16 %v2219, %v2217
    %v2250 = vpack.c.b16 %v2220, %v2218
    %v2251 = vpack.c.b16 %v2223, %v2221
    %v2252 = vpack.c.b16 %v2224, %v2222
    %v2253 = vpack.c.b16 %v2227, %v2225
    %v2254 = vpack.c.b16 %v2228, %v2226
    %v2255 = vpack.c.b16 %v2231, %v2229
    %v2256 = vpack.c.b16 %v2232, %v2230
    %v2257 = vpack.c.b16 %v2235, %v2233
    %v2258 = vpack.c.b16 %v2236, %v2234
    %v2259 = vpack.c.b16 %v2239, %v2237
    %v2260 = vpack.c.b16 %v2240, %v2238
    %v2261 = vpack.c.b16 %v2243, %v2241
    %v2262 = vpack.c.b16 %v2244, %v2242
    %v2263 = vpack.c.b16 %v2247, %v2245
    %v2264 = vpack.c.b16 %v2248, %v2246
    %2281 = vmatpush.bf16.msra.mxu0 %v2263
    %2282 = vmatpush.bf16.msra.mxu0 %v2261
    %2283 = vmatpush.bf16.msra.mxu0 %v2259
    %2284 = vmatpush.bf16.msra.mxu0 %v2257
    %2285 = vmatpush.bf16.msra.mxu0 %v2255
    %2286 = vmatpush.bf16.msra.mxu0 %v2253
    %2287 = vmatpush.bf16.msra.mxu0 %v2251
    %2288 = vmatpush.bf16.msra.mxu0 %v2249
    %2289 = vmatmul.bf16.gmra.mxu0 %v2178
    %v2290 = vpop.f32.mrf.mxu0
    %v2291 = vadd.f32 %v2197, %v2290
    %v2292 = vpop.f32.mrf.mxu0
    %2293 = vdwg.mxu0
    %2294 = vmatpush.bf16.msra.mxu0 %v2264
    %2295 = vmatpush.bf16.msra.mxu0 %v2262
    %2296 = vmatpush.bf16.msra.mxu0 %v2260
    %2297 = vmatpush.bf16.msra.mxu0 %v2258
    %2298 = vmatpush.bf16.msra.mxu0 %v2256
    %2299 = vmatpush.bf16.msra.mxu0 %v2254
    %2300 = vmatpush.bf16.msra.mxu0 %v2252
    %2301 = vmatpush.bf16.msra.mxu0 %v2250
    %2302 = vmatmul.bf16.gmra.mxu0 %v2178
    %v2303 = vpop.f32.mrf.mxu0
    %v2304 = vadd.f32 %v2198, %v2303
    %v2305 = vpop.f32.mrf.mxu0
    %2306 = vdwg.mxu0
    %2307 = vst [vmem:[#allocation19] sm:$0xff] %v2291
    %2308 = vst [vmem:[#allocation19 + $0x8] sm:$0xff] %v2304
    // Predicated region
    $region82: #{tpu_custom_call.1} parent=1 // pred_check
      _
    $region83: #{tpu_custom_call.1} parent=1 // pred_check_branch
      %2310 = sbr.rel (0) target = $region85
    $region84: #{tpu_custom_call.1} parent=1 // pred_region
      %2312 = vsyncadd [#allocation5], 0
      %s2314 = sshll.u32 [#allocation19], 4
      %s2315 = int_to_ptr.vmem [resolvable:$true] %s2314
      %s2316 = sshll.u32 %s11, 4
      %s2317 = int_to_ptr.hbm [resolvable:$true] %s2316
      %2319 = dma.vmem_to_hbm [thread:$0]  %s2315, 256, %s2317, [#allocation5]
    $region85: #{tpu_custom_call.1} parent=1 // pred_fallthru
      _
    // Predicated region
    $region86: #{tpu_custom_call.1} parent=1 // pred_check
      _
    $region87: #{tpu_custom_call.1} parent=1 // pred_check_branch
      %2321 = sbr.rel (0) target = $region89
    $region88: #{tpu_custom_call.1} parent=1 // pred_region
      %2323 = vsyncadd [#allocation21], 0
      %s2324 = sshll.u32 [#allocation20], 4
      %s2325 = int_to_ptr.vmem [resolvable:$true] %s2324
      %s2326 = sshll.u32 %s12, 4
      %s2327 = int_to_ptr.hbm [resolvable:$true] %s2326
      %2332 = dma.vmem_to_hbm [thread:$0]  %s2325, 256, %s2327, [#allocation21], 128, 128, 8
    $region89: #{tpu_custom_call.1} parent=1 // pred_fallthru
      _
    // Predicated region
    $region90: #{tpu_custom_call.1} parent=1 // pred_check
      _
    $region91: #{tpu_custom_call.1} parent=1 // pred_check_branch
      %2334 = sbr.rel (0) target = $region93
    $region92: #{tpu_custom_call.1} parent=1 // pred_region
      %2336 = vsyncadd [#allocation21], 0
      %s2337 = sshll.u32 [#allocation22], 4
      %s2338 = int_to_ptr.vmem [resolvable:$true] %s2337
      %s2339 = sshll.u32 %s13, 4
      %s2340 = int_to_ptr.hbm [resolvable:$true] %s2339
      %2345 = dma.vmem_to_hbm [thread:$0]  %s2338, 256, %s2340, [#allocation21], 128, 128, 8
    $region93: #{tpu_custom_call.1} parent=1 // pred_fallthru
      _
    // Predicated region
    $region94: #{tpu_custom_call.1} parent=1 // pred_check
      _
    $region95: #{tpu_custom_call.1} parent=1 // pred_check_branch
      %2347 = sbr.rel (0) target = $region97
    $region96: #{tpu_custom_call.1} parent=1 // pred_region
      %2349 = vsyncadd [#allocation24], 0
      %s2351 = sshll.u32 [#allocation23], 4
      %s2352 = int_to_ptr.vmem [resolvable:$true] %s2351
      %s2353 = sshll.u32 %s14, 4
      %s2354 = int_to_ptr.hbm [resolvable:$true] %s2353
      %2356 = dma.vmem_to_hbm [thread:$0]  %s2352, 128, %s2354, [#allocation24]
    $region97: #{tpu_custom_call.1} parent=1 // pred_fallthru
      _
    // Predicated region
    $region98: #{tpu_custom_call.1} parent=1 // pred_check
      _
    $region99: #{tpu_custom_call.1} parent=1 // pred_check_branch
      %2358 = sbr.rel (0) target = $region101
    $region100: #{tpu_custom_call.1} parent=1 // pred_region
      %2360 = dma.done [#allocation5], 256
    $region101: #{tpu_custom_call.1} parent=1 // pred_fallthru
      _
    // Predicated region
    $region102: #{tpu_custom_call.1} parent=1 // pred_check
      _
    $region103: #{tpu_custom_call.1} parent=1 // pred_check_branch
      %2362 = sbr.rel (0) target = $region105
    $region104: #{tpu_custom_call.1} parent=1 // pred_region
      %2364 = dma.done [#allocation21], 256
    $region105: #{tpu_custom_call.1} parent=1 // pred_fallthru
      _
    // Predicated region
    $region106: #{tpu_custom_call.1} parent=1 // pred_check
      _
    $region107: #{tpu_custom_call.1} parent=1 // pred_check_branch
      %2366 = sbr.rel (0) target = $region109
    $region108: #{tpu_custom_call.1} parent=1 // pred_region
      %2368 = dma.done [#allocation21], 256
    $region109: #{tpu_custom_call.1} parent=1 // pred_fallthru
      _
    // Predicated region
    $region110: #{tpu_custom_call.1} parent=1 // pred_check
      _
    $region111: #{tpu_custom_call.1} parent=1 // pred_check_branch
      %2370 = sbr.rel (0) target = $region113
    $region112: #{tpu_custom_call.1} parent=1 // pred_region
      %2372 = dma.done [#allocation24], 128
    $region113: #{tpu_custom_call.1} parent=1 // pred_fallthru
      _
    %2373 = vsyncpa [#allocation4], 1
    %2374 = vsyncpa [#allocation9], 1
    %2375 = vsyncpa [#allocation12], 1
    %2376 = vsyncpa [#allocation15], 1
    %2377 = vsyncpa [#allocation18], 1
    %2378 = vsyncpa [#allocation5], 1
    %2379 = vsyncpa [#allocation21], 1
    %2380 = vsyncpa [#allocation24], 1
    %2381 = vsyncpa [#allocation6], 1

</llo_original>
